<compile_context>
chip_gen: v7x
topology: tpu7x:2x2x1
jax: 0.10.0
libtpu: 0.0.40
codegen_flags: <defaults>
</compile_context>

<pallas_src>
import functools

import jax
import jax.numpy as jnp
import numpy as np
from jax.experimental import pallas as pl
from jax.experimental.pallas import tpu as pltpu


# ----------------------- fused bidirectional GRU + Linear kernel -----------------------
def bigru_linear_kernel(x_ref, mask_ref, wih_ref, whh_ref, bgi_ref, bgh_ref,
                        wlin_ref, blin_ref, out_ref, *, T, B, H):
    """x_ref:    (T*B, E)   f32  embedded tokens, row t*B+b = token (t, b)
       mask_ref: (T*B, 1)   f32  1.0 if t < seq_length[b] else 0.0
       wih_ref:  (E, 6H)    f32  [Wih_fwd(r,z,n) | Wih_bwd(r,z,n)]
       whh_ref:  (2H, 6H)   f32  block-diag: [[Whh_fwd, 0], [0, Whh_bwd]]
       bgi_ref:  (1, 6H)    f32  input-side biases (r,z folded with b_hh; n = b_ih_n)
       bgh_ref:  (1, 6H)    f32  hidden-side biases (zeros except n slots = b_hh_n)
       wlin_ref: (2H, O)    f32
       blin_ref: (1, O)     f32
       out_ref:  (B, O)     f32
    """
    H3 = 3 * H

    x = x_ref[...]                                   # (T*B, E)
    # One big input-projection matmul for BOTH directions and ALL timesteps.
    gi_all = jnp.dot(x, wih_ref[...],
                     preferred_element_type=jnp.float32) + bgi_ref[...]   # (T*B, 6H)

    whh = whh_ref[...]                               # (2H, 6H)
    bgh = bgh_ref[...]                               # (1, 6H)
    mask = mask_ref[...]                             # (T*B, 1)

    h_f = jnp.zeros((B, H), jnp.float32)
    h_b = jnp.zeros((B, H), jnp.float32)

    def gru_cell(gi, gh, h_prev, off):
        # gi/gh are (B, 6H); this direction's gates live in lanes [off, off+3H).
        r = jax.nn.sigmoid(gi[:, off:off + H] + gh[:, off:off + H])
        z = jax.nn.sigmoid(gi[:, off + H:off + 2 * H] + gh[:, off + H:off + 2 * H])
        n = jnp.tanh(gi[:, off + 2 * H:off + 3 * H] + r * gh[:, off + 2 * H:off + 3 * H])
        return (1.0 - z) * n + z * h_prev

    # T is tiny and static -> fully unrolled time loop; h_f/h_b stay in vregs.
    for t in range(T):
        tb = T - 1 - t                               # backward-direction timestep

        # Single recurrent matmul for both directions (block-diagonal weights).
        h_cat = jnp.concatenate([h_f, h_b], axis=1)                          # (B, 2H)
        gh = jnp.dot(h_cat, whh, preferred_element_type=jnp.float32) + bgh   # (B, 6H)

        gi_f = gi_all[t * B:(t + 1) * B, :]          # (B, 6H), fwd lanes [0, 3H)
        gi_b = gi_all[tb * B:(tb + 1) * B, :]        # (B, 6H), bwd lanes [3H, 6H)

        hn_f = gru_cell(gi_f, gh, h_f, 0)
        hn_b = gru_cell(gi_b, gh, h_b, H3)

        # pack_padded_sequence emulation: only update while inside the sequence.
        m_f = mask[t * B:(t + 1) * B, :]             # (B, 1)
        m_b = mask[tb * B:(tb + 1) * B, :]           # (B, 1)
        h_f = m_f * hn_f + (1.0 - m_f) * h_f
        h_b = m_b * hn_b + (1.0 - m_b) * h_b

    # Fused final Linear on cat(h_fwd_final, h_bwd_final).
    h_final = jnp.concatenate([h_f, h_b], axis=1)                            # (B, 2H)
    out_ref[...] = (jnp.dot(h_final, wlin_ref[...],
                            preferred_element_type=jnp.float32) + blin_ref[...])


def _pack_direction(g, H):
    """(3,E,H)/(3,H,H)/(3,1,H) gate weights -> concatenated (E,3H)/(H,3H)/(1,3H)."""
    wih = jnp.concatenate([g["wih"][0], g["wih"][1], g["wih"][2]], axis=1)   # (E, 3H)
    whh = jnp.concatenate([g["whh"][0], g["whh"][1], g["whh"][2]], axis=1)   # (H, 3H)
    # Fold b_hh into b_ih for r and z; keep b_hh_n on the hidden side (it must be
    # inside the r * (.) product).
    bgi = jnp.concatenate([g["bih"][0] + g["bhh"][0],
                           g["bih"][1] + g["bhh"][1],
                           g["bih"][2]], axis=1)                             # (1, 3H)
    bgh = jnp.concatenate([jnp.zeros((1, 2 * H), jnp.float32),
                           g["bhh"][2]], axis=1)                             # (1, 3H)
    return wih, whh, bgi, bgh


# ------------------------------- Model forward pass -------------------------------
def model_forward(params, x, seq_length, *, bidirectional):
    """x: (T, B) int32 token ids; seq_length: (B,) int32 -> (B, output_size) f32."""
    T, B = x.shape
    O = params["w_lin"].shape[-1]

    if not bidirectional:
        # Faithful to the PyTorch module: `self.linear(hidden)` uses the *initial*
        # zero hidden state, so linear(0) == bias; the GRU result is dead work and
        # the kernel is skipped entirely.
        return jnp.broadcast_to(params["b_lin"].reshape(1, O), (B, O))

    # --- glue: embedding lookup, validity mask, lane-dense weight packing ---
    x_emb = jnp.take(params["emb"], x, axis=0).astype(jnp.float32)           # (T, B, E)
    E = x_emb.shape[-1]
    x_flat = x_emb.reshape(T * B, E)                                         # row t*B+b
    mask = (jnp.arange(T)[:, None] < seq_length[None, :]).astype(jnp.float32)
    mask_flat = mask.reshape(T * B, 1)

    f, b = params["gru_fwd"], params["gru_bwd"]
    H = f["whh"].shape[-1]
    wih_f, whh_f, bgi_f, bgh_f = _pack_direction(f, H)
    wih_b, whh_b, bgi_b, bgh_b = _pack_direction(b, H)

    wih = jnp.concatenate([wih_f, wih_b], axis=1)                            # (E, 6H)
    zeros = jnp.zeros((H, 3 * H), jnp.float32)
    whh = jnp.concatenate(
        [jnp.concatenate([whh_f, zeros], axis=1),
         jnp.concatenate([zeros, whh_b], axis=1)], axis=0)                   # (2H, 6H)
    bgi = jnp.concatenate([bgi_f, bgi_b], axis=1)                            # (1, 6H)
    bgh = jnp.concatenate([bgh_f, bgh_b], axis=1)                            # (1, 6H)
    w_lin = params["w_lin"]                                                  # (2H, O)
    b_lin = params["b_lin"].reshape(1, O)

    kernel = functools.partial(bigru_linear_kernel, T=T, B=B, H=H)
    return pl.pallas_call(
        kernel,
        out_shape=jax.ShapeDtypeStruct((B, O), jnp.float32),
        grid=(1,),
        in_specs=[
            pl.BlockSpec((T * B, E), lambda i: (0, 0)),       # x_flat
            pl.BlockSpec((T * B, 1), lambda i: (0, 0)),       # mask
            pl.BlockSpec((E, 6 * H), lambda i: (0, 0)),       # W_ih (both dirs)
            pl.BlockSpec((2 * H, 6 * H), lambda i: (0, 0)),   # W_hh block-diag
            pl.BlockSpec((1, 6 * H), lambda i: (0, 0)),       # input-side biases
            pl.BlockSpec((1, 6 * H), lambda i: (0, 0)),       # hidden-side biases
            pl.BlockSpec((2 * H, O), lambda i: (0, 0)),       # W_lin
            pl.BlockSpec((1, O), lambda i: (0, 0)),           # b_lin
        ],
        out_specs=pl.BlockSpec((B, O), lambda i: (0, 0)),
        compiler_params=pltpu.CompilerParams(dimension_semantics=("arbitrary",)),
    )(x_flat, mask_flat, wih, whh, bgi, bgh, w_lin, b_lin)


# ------------------------------- Pure-JAX reference -------------------------------
def gru_ref_direction(x_emb, seq_length, gp, *, reverse):
    T, B, E = x_emb.shape
    H = gp["whh"].shape[-1]
    h = jnp.zeros((B, H), jnp.float32)
    ts = range(T - 1, -1, -1) if reverse else range(T)
    for t in ts:
        x_t = x_emb[t]
        i_r = x_t @ gp["wih"][0] + gp["bih"][0]
        i_z = x_t @ gp["wih"][1] + gp["bih"][1]
        i_n = x_t @ gp["wih"][2] + gp["bih"][2]
        h_r = h @ gp["whh"][0] + gp["bhh"][0]
        h_z = h @ gp["whh"][1] + gp["bhh"][1]
        h_n = h @ gp["whh"][2] + gp["bhh"][2]
        r = jax.nn.sigmoid(i_r + h_r)
        z = jax.nn.sigmoid(i_z + h_z)
        n = jnp.tanh(i_n + r * h_n)
        h_new = (1.0 - z) * n + z * h
        mask = (t < seq_length).reshape(B, 1)
        h = jnp.where(mask, h_new, h)
    return h


def model_ref(params, x, seq_length, *, bidirectional):
    x_emb = jnp.take(params["emb"], x, axis=0).astype(jnp.float32)
    h_fwd = gru_ref_direction(x_emb, seq_length, params["gru_fwd"], reverse=False)
    if bidirectional:
        h_bwd = gru_ref_direction(x_emb, seq_length, params["gru_bwd"], reverse=True)
        h_in = jnp.concatenate([h_fwd, h_bwd], axis=1)
    else:
        h_in = jnp.zeros_like(h_fwd)
    return h_in @ params["w_lin"] + params["b_lin"]


# ------------------------------------- Main ----------------------------------------
def init_params(key, vocab, emb_size, hidden, output, bidirectional):
    ks = jax.random.split(key, 16)
    s_ih = 1.0 / np.sqrt(emb_size)
    s_hh = 1.0 / np.sqrt(hidden)

    def gru_params(k0, k1, k2, k3):
        return {
            "wih": jax.random.uniform(k0, (3, emb_size, hidden), jnp.float32, -s_ih, s_ih),
            "whh": jax.random.uniform(k1, (3, hidden, hidden), jnp.float32, -s_hh, s_hh),
            "bih": jax.random.uniform(k2, (3, 1, hidden), jnp.float32, -s_hh, s_hh),
            "bhh": jax.random.uniform(k3, (3, 1, hidden), jnp.float32, -s_hh, s_hh),
        }

    d = 2 if bidirectional else 1
    s_lin = 1.0 / np.sqrt(hidden * d)
    params = {
        "emb": jax.random.normal(ks[0], (vocab, emb_size), jnp.float32),
        "gru_fwd": gru_params(ks[1], ks[2], ks[3], ks[4]),
        "gru_bwd": gru_params(ks[5], ks[6], ks[7], ks[8]),
        "w_lin": jax.random.uniform(ks[9], (hidden * d, output), jnp.float32, -s_lin, s_lin),
        "b_lin": jax.random.uniform(ks[10], (output,), jnp.float32, -s_lin, s_lin),
    }
    return params


if __name__ == "__main__":
    # Small shapes consistent with the module's forward.
    VOCAB, EMB, HIDDEN, OUTPUT = 32, 16, 32, 8
    T, BATCH = 8, 2  # Batch_size = 2 in the original script

    key = jax.random.PRNGKey(0)
    k_tok, k_par_bi, k_par_uni = jax.random.split(key, 3)

    x = jax.random.randint(k_tok, (T, BATCH), 0, VOCAB, dtype=jnp.int32)  # (T, B)
    seq_length = jnp.array([T, 5], dtype=jnp.int32)                       # (B,)

    # Bidirectional=True path (single fused GRU+Linear Pallas kernel).
    params_bi = init_params(k_par_bi, VOCAB, EMB, HIDDEN, OUTPUT, bidirectional=True)
    out_bi = model_forward(params_bi, x, seq_length, bidirectional=True)
    out_bi = jax.block_until_ready(out_bi)
    ref_bi = model_ref(params_bi, x, seq_length, bidirectional=True)
    np.testing.assert_allclose(np.asarray(out_bi), np.asarray(ref_bi), atol=1e-4, rtol=1e-4)

    # Bidirectional=False path: the module feeds the *initial zero* hidden to the
    # linear, so the result is just the bias broadcast (GRU skipped as dead work).
    params_uni = init_params(k_par_uni, VOCAB, EMB, HIDDEN, OUTPUT, bidirectional=False)
    out_uni = model_forward(params_uni, x, seq_length, bidirectional=False)
    out_uni = jax.block_until_ready(out_uni)
    ref_uni = model_ref(params_uni, x, seq_length, bidirectional=False)
    np.testing.assert_allclose(np.asarray(out_uni), np.asarray(ref_uni), atol=1e-4, rtol=1e-4)

    assert out_bi.shape == (BATCH, OUTPUT) and out_uni.shape == (BATCH, OUTPUT)
    print("KERNEL_OK")
</pallas_src>

<mosaic_0001>
module attributes {stable_mosaic.version = 11 : i64} {
  func.func @bigru_linear_kernel(%arg0: i32, %arg1: memref<16x16xf32, #tpu.memory_space<vmem>>, %arg2: memref<16x1xf32, #tpu.memory_space<vmem>>, %arg3: memref<16x192xf32, #tpu.memory_space<vmem>>, %arg4: memref<64x192xf32, #tpu.memory_space<vmem>>, %arg5: memref<1x192xf32, #tpu.memory_space<vmem>>, %arg6: memref<1x192xf32, #tpu.memory_space<vmem>>, %arg7: memref<64x8xf32, #tpu.memory_space<vmem>>, %arg8: memref<1x8xf32, #tpu.memory_space<vmem>>, %arg9: memref<2x8xf32, #tpu.memory_space<vmem>>) attributes {dimension_semantics = [#tpu.dimension_semantics<arbitrary>], iteration_bounds = array<i64: 1>, scalar_prefetch = 0 : i64, scratch_operands = 0 : i64, tpu.core_type = #tpu.core_type<tc>, window_params = [{pipeline_mode = #tpu.pipeline_mode<synchronous>, transform_indices = @transform_0, window_bounds = array<i64: 16, 16>}, {pipeline_mode = #tpu.pipeline_mode<synchronous>, transform_indices = @transform_1, window_bounds = array<i64: 16, 1>}, {pipeline_mode = #tpu.pipeline_mode<synchronous>, transform_indices = @transform_2, window_bounds = array<i64: 16, 192>}, {pipeline_mode = #tpu.pipeline_mode<synchronous>, transform_indices = @transform_3, window_bounds = array<i64: 64, 192>}, {pipeline_mode = #tpu.pipeline_mode<synchronous>, transform_indices = @transform_4, window_bounds = array<i64: 1, 192>}, {pipeline_mode = #tpu.pipeline_mode<synchronous>, transform_indices = @transform_5, window_bounds = array<i64: 1, 192>}, {pipeline_mode = #tpu.pipeline_mode<synchronous>, transform_indices = @transform_6, window_bounds = array<i64: 64, 8>}, {pipeline_mode = #tpu.pipeline_mode<synchronous>, transform_indices = @transform_7, window_bounds = array<i64: 1, 8>}, {pipeline_mode = #tpu.pipeline_mode<synchronous>, transform_indices = @transform_8, window_bounds = array<i64: 2, 8>}]} {
    %c0 = arith.constant 0 : index
    %c0_0 = arith.constant 0 : index
    %0 = vector.load %arg1[%c0, %c0_0] : memref<16x16xf32, #tpu.memory_space<vmem>>, vector<16x16xf32>
    %c0_1 = arith.constant 0 : index
    %c0_2 = arith.constant 0 : index
    %1 = vector.load %arg3[%c0_1, %c0_2] : memref<16x192xf32, #tpu.memory_space<vmem>>, vector<16x192xf32>
    %cst = arith.constant dense<0.000000e+00> : vector<16x192xf32>
    %2 = tpu.matmul %0, %1, %cst {dimension_numbers = #tpu.dot_dimension_numbers<[1], [0], [0], [1], [0, 0, 1, 1], [], []>} : vector<16x16xf32>, vector<16x192xf32>, vector<16x192xf32> -> vector<16x192xf32>
    %c0_3 = arith.constant 0 : index
    %c0_4 = arith.constant 0 : index
    %3 = vector.load %arg5[%c0_3, %c0_4] : memref<1x192xf32, #tpu.memory_space<vmem>>, vector<1x192xf32>
    %4 = vector.broadcast %3 : vector<1x192xf32> to vector<16x192xf32>
    %5 = arith.addf %2, %4 : vector<16x192xf32>
    %c0_5 = arith.constant 0 : index
    %c0_6 = arith.constant 0 : index
    %6 = vector.load %arg4[%c0_5, %c0_6] : memref<64x192xf32, #tpu.memory_space<vmem>>, vector<64x192xf32>
    %c0_7 = arith.constant 0 : index
    %c0_8 = arith.constant 0 : index
    %7 = vector.load %arg6[%c0_7, %c0_8] : memref<1x192xf32, #tpu.memory_space<vmem>>, vector<1x192xf32>
    %c0_9 = arith.constant 0 : index
    %c0_10 = arith.constant 0 : index
    %8 = vector.load %arg2[%c0_9, %c0_10] : memref<16x1xf32, #tpu.memory_space<vmem>>, vector<16x1xf32>
    %cst_11 = arith.constant 0.000000e+00 : f32
    %9 = vector.broadcast %cst_11 : f32 to vector<2x32xf32>
    %cst_12 = arith.constant 0.000000e+00 : f32
    %10 = vector.broadcast %cst_12 : f32 to vector<2x32xf32>
    %11 = tpu.concatenate %9, %10 in 1 : vector<2x32xf32>, vector<2x32xf32> -> vector<2x64xf32>
    %cst_13 = arith.constant dense<0.000000e+00> : vector<2x192xf32>
    %12 = tpu.matmul %11, %6, %cst_13 {dimension_numbers = #tpu.dot_dimension_numbers<[1], [0], [0], [1], [0, 0, 1, 1], [], []>} : vector<2x64xf32>, vector<64x192xf32>, vector<2x192xf32> -> vector<2x192xf32>
    %13 = vector.broadcast %7 : vector<1x192xf32> to vector<2x192xf32>
    %14 = arith.addf %12, %13 : vector<2x192xf32>
    %15 = vector.extract_strided_slice %5 {offsets = [0, 0], sizes = [2, 192], strides = [1, 1]} : vector<16x192xf32> to vector<2x192xf32>
    %16 = vector.extract_strided_slice %5 {offsets = [14, 0], sizes = [2, 192], strides = [1, 1]} : vector<16x192xf32> to vector<2x192xf32>
    %17 = vector.extract_strided_slice %15 {offsets = [0, 0], sizes = [2, 32], strides = [1, 1]} : vector<2x192xf32> to vector<2x32xf32>
    %18 = vector.extract_strided_slice %14 {offsets = [0, 0], sizes = [2, 32], strides = [1, 1]} : vector<2x192xf32> to vector<2x32xf32>
    %19 = arith.addf %17, %18 : vector<2x32xf32>
    %20 = arith.negf %19 : vector<2x32xf32>
    %21 = math.exp %20 : vector<2x32xf32>
    %cst_14 = arith.constant 1.000000e+00 : f32
    %22 = vector.broadcast %cst_14 : f32 to vector<2x32xf32>
    %23 = arith.addf %22, %21 : vector<2x32xf32>
    %24 = arith.divf %22, %23 : vector<2x32xf32>
    %25 = vector.extract_strided_slice %15 {offsets = [0, 32], sizes = [2, 32], strides = [1, 1]} : vector<2x192xf32> to vector<2x32xf32>
    %26 = vector.extract_strided_slice %14 {offsets = [0, 32], sizes = [2, 32], strides = [1, 1]} : vector<2x192xf32> to vector<2x32xf32>
    %27 = arith.addf %25, %26 : vector<2x32xf32>
    %28 = arith.negf %27 : vector<2x32xf32>
    %29 = math.exp %28 : vector<2x32xf32>
    %cst_15 = arith.constant 1.000000e+00 : f32
    %30 = vector.broadcast %cst_15 : f32 to vector<2x32xf32>
    %31 = arith.addf %30, %29 : vector<2x32xf32>
    %32 = arith.divf %30, %31 : vector<2x32xf32>
    %33 = vector.extract_strided_slice %15 {offsets = [0, 64], sizes = [2, 32], strides = [1, 1]} : vector<2x192xf32> to vector<2x32xf32>
    %34 = vector.extract_strided_slice %14 {offsets = [0, 64], sizes = [2, 32], strides = [1, 1]} : vector<2x192xf32> to vector<2x32xf32>
    %35 = arith.mulf %24, %34 : vector<2x32xf32>
    %36 = arith.addf %33, %35 : vector<2x32xf32>
    %37 = math.tanh %36 : vector<2x32xf32>
    %cst_16 = arith.constant 1.000000e+00 : f32
    %38 = vector.broadcast %cst_16 : f32 to vector<2x32xf32>
    %39 = arith.subf %38, %32 : vector<2x32xf32>
    %40 = arith.mulf %39, %37 : vector<2x32xf32>
    %41 = arith.mulf %32, %9 : vector<2x32xf32>
    %42 = arith.addf %40, %41 : vector<2x32xf32>
    %43 = vector.extract_strided_slice %16 {offsets = [0, 96], sizes = [2, 32], strides = [1, 1]} : vector<2x192xf32> to vector<2x32xf32>
    %44 = vector.extract_strided_slice %14 {offsets = [0, 96], sizes = [2, 32], strides = [1, 1]} : vector<2x192xf32> to vector<2x32xf32>
    %45 = arith.addf %43, %44 : vector<2x32xf32>
    %46 = arith.negf %45 : vector<2x32xf32>
    %47 = math.exp %46 : vector<2x32xf32>
    %cst_17 = arith.constant 1.000000e+00 : f32
    %48 = vector.broadcast %cst_17 : f32 to vector<2x32xf32>
    %49 = arith.addf %48, %47 : vector<2x32xf32>
    %50 = arith.divf %48, %49 : vector<2x32xf32>
    %51 = vector.extract_strided_slice %16 {offsets = [0, 128], sizes = [2, 32], strides = [1, 1]} : vector<2x192xf32> to vector<2x32xf32>
    %52 = vector.extract_strided_slice %14 {offsets = [0, 128], sizes = [2, 32], strides = [1, 1]} : vector<2x192xf32> to vector<2x32xf32>
    %53 = arith.addf %51, %52 : vector<2x32xf32>
    %54 = arith.negf %53 : vector<2x32xf32>
    %55 = math.exp %54 : vector<2x32xf32>
    %cst_18 = arith.constant 1.000000e+00 : f32
    %56 = vector.broadcast %cst_18 : f32 to vector<2x32xf32>
    %57 = arith.addf %56, %55 : vector<2x32xf32>
    %58 = arith.divf %56, %57 : vector<2x32xf32>
    %59 = vector.extract_strided_slice %16 {offsets = [0, 160], sizes = [2, 32], strides = [1, 1]} : vector<2x192xf32> to vector<2x32xf32>
    %60 = vector.extract_strided_slice %14 {offsets = [0, 160], sizes = [2, 32], strides = [1, 1]} : vector<2x192xf32> to vector<2x32xf32>
    %61 = arith.mulf %50, %60 : vector<2x32xf32>
    %62 = arith.addf %59, %61 : vector<2x32xf32>
    %63 = math.tanh %62 : vector<2x32xf32>
    %cst_19 = arith.constant 1.000000e+00 : f32
    %64 = vector.broadcast %cst_19 : f32 to vector<2x32xf32>
    %65 = arith.subf %64, %58 : vector<2x32xf32>
    %66 = arith.mulf %65, %63 : vector<2x32xf32>
    %67 = arith.mulf %58, %10 : vector<2x32xf32>
    %68 = arith.addf %66, %67 : vector<2x32xf32>
    %69 = vector.extract_strided_slice %8 {offsets = [0, 0], sizes = [2, 1], strides = [1, 1]} : vector<16x1xf32> to vector<2x1xf32>
    %70 = vector.extract_strided_slice %8 {offsets = [14, 0], sizes = [2, 1], strides = [1, 1]} : vector<16x1xf32> to vector<2x1xf32>
    %71 = vector.broadcast %69 : vector<2x1xf32> to vector<2x32xf32>
    %72 = arith.mulf %71, %42 : vector<2x32xf32>
    %cst_20 = arith.constant 1.000000e+00 : f32
    %73 = vector.broadcast %cst_20 : f32 to vector<2x1xf32>
    %74 = arith.subf %73, %69 : vector<2x1xf32>
    %75 = vector.broadcast %74 : vector<2x1xf32> to vector<2x32xf32>
    %76 = arith.mulf %75, %9 : vector<2x32xf32>
    %77 = arith.addf %72, %76 : vector<2x32xf32>
    %78 = vector.broadcast %70 : vector<2x1xf32> to vector<2x32xf32>
    %79 = arith.mulf %78, %68 : vector<2x32xf32>
    %cst_21 = arith.constant 1.000000e+00 : f32
    %80 = vector.broadcast %cst_21 : f32 to vector<2x1xf32>
    %81 = arith.subf %80, %70 : vector<2x1xf32>
    %82 = vector.broadcast %81 : vector<2x1xf32> to vector<2x32xf32>
    %83 = arith.mulf %82, %10 : vector<2x32xf32>
    %84 = arith.addf %79, %83 : vector<2x32xf32>
    %85 = tpu.concatenate %77, %84 in 1 : vector<2x32xf32>, vector<2x32xf32> -> vector<2x64xf32>
    %cst_22 = arith.constant dense<0.000000e+00> : vector<2x192xf32>
    %86 = tpu.matmul %85, %6, %cst_22 {dimension_numbers = #tpu.dot_dimension_numbers<[1], [0], [0], [1], [0, 0, 1, 1], [], []>} : vector<2x64xf32>, vector<64x192xf32>, vector<2x192xf32> -> vector<2x192xf32>
    %87 = vector.broadcast %7 : vector<1x192xf32> to vector<2x192xf32>
    %88 = arith.addf %86, %87 : vector<2x192xf32>
    %89 = vector.extract_strided_slice %5 {offsets = [2, 0], sizes = [2, 192], strides = [1, 1]} : vector<16x192xf32> to vector<2x192xf32>
    %90 = vector.extract_strided_slice %5 {offsets = [12, 0], sizes = [2, 192], strides = [1, 1]} : vector<16x192xf32> to vector<2x192xf32>
    %91 = vector.extract_strided_slice %89 {offsets = [0, 0], sizes = [2, 32], strides = [1, 1]} : vector<2x192xf32> to vector<2x32xf32>
    %92 = vector.extract_strided_slice %88 {offsets = [0, 0], sizes = [2, 32], strides = [1, 1]} : vector<2x192xf32> to vector<2x32xf32>
    %93 = arith.addf %91, %92 : vector<2x32xf32>
    %94 = arith.negf %93 : vector<2x32xf32>
    %95 = math.exp %94 : vector<2x32xf32>
    %cst_23 = arith.constant 1.000000e+00 : f32
    %96 = vector.broadcast %cst_23 : f32 to vector<2x32xf32>
    %97 = arith.addf %96, %95 : vector<2x32xf32>
    %98 = arith.divf %96, %97 : vector<2x32xf32>
    %99 = vector.extract_strided_slice %89 {offsets = [0, 32], sizes = [2, 32], strides = [1, 1]} : vector<2x192xf32> to vector<2x32xf32>
    %100 = vector.extract_strided_slice %88 {offsets = [0, 32], sizes = [2, 32], strides = [1, 1]} : vector<2x192xf32> to vector<2x32xf32>
    %101 = arith.addf %99, %100 : vector<2x32xf32>
    %102 = arith.negf %101 : vector<2x32xf32>
    %103 = math.exp %102 : vector<2x32xf32>
    %cst_24 = arith.constant 1.000000e+00 : f32
    %104 = vector.broadcast %cst_24 : f32 to vector<2x32xf32>
    %105 = arith.addf %104, %103 : vector<2x32xf32>
    %106 = arith.divf %104, %105 : vector<2x32xf32>
    %107 = vector.extract_strided_slice %89 {offsets = [0, 64], sizes = [2, 32], strides = [1, 1]} : vector<2x192xf32> to vector<2x32xf32>
    %108 = vector.extract_strided_slice %88 {offsets = [0, 64], sizes = [2, 32], strides = [1, 1]} : vector<2x192xf32> to vector<2x32xf32>
    %109 = arith.mulf %98, %108 : vector<2x32xf32>
    %110 = arith.addf %107, %109 : vector<2x32xf32>
    %111 = math.tanh %110 : vector<2x32xf32>
    %cst_25 = arith.constant 1.000000e+00 : f32
    %112 = vector.broadcast %cst_25 : f32 to vector<2x32xf32>
    %113 = arith.subf %112, %106 : vector<2x32xf32>
    %114 = arith.mulf %113, %111 : vector<2x32xf32>
    %115 = arith.mulf %106, %77 : vector<2x32xf32>
    %116 = arith.addf %114, %115 : vector<2x32xf32>
    %117 = vector.extract_strided_slice %90 {offsets = [0, 96], sizes = [2, 32], strides = [1, 1]} : vector<2x192xf32> to vector<2x32xf32>
    %118 = vector.extract_strided_slice %88 {offsets = [0, 96], sizes = [2, 32], strides = [1, 1]} : vector<2x192xf32> to vector<2x32xf32>
    %119 = arith.addf %117, %118 : vector<2x32xf32>
    %120 = arith.negf %119 : vector<2x32xf32>
    %121 = math.exp %120 : vector<2x32xf32>
    %cst_26 = arith.constant 1.000000e+00 : f32
    %122 = vector.broadcast %cst_26 : f32 to vector<2x32xf32>
    %123 = arith.addf %122, %121 : vector<2x32xf32>
    %124 = arith.divf %122, %123 : vector<2x32xf32>
    %125 = vector.extract_strided_slice %90 {offsets = [0, 128], sizes = [2, 32], strides = [1, 1]} : vector<2x192xf32> to vector<2x32xf32>
    %126 = vector.extract_strided_slice %88 {offsets = [0, 128], sizes = [2, 32], strides = [1, 1]} : vector<2x192xf32> to vector<2x32xf32>
    %127 = arith.addf %125, %126 : vector<2x32xf32>
    %128 = arith.negf %127 : vector<2x32xf32>
    %129 = math.exp %128 : vector<2x32xf32>
    %cst_27 = arith.constant 1.000000e+00 : f32
    %130 = vector.broadcast %cst_27 : f32 to vector<2x32xf32>
    %131 = arith.addf %130, %129 : vector<2x32xf32>
    %132 = arith.divf %130, %131 : vector<2x32xf32>
    %133 = vector.extract_strided_slice %90 {offsets = [0, 160], sizes = [2, 32], strides = [1, 1]} : vector<2x192xf32> to vector<2x32xf32>
    %134 = vector.extract_strided_slice %88 {offsets = [0, 160], sizes = [2, 32], strides = [1, 1]} : vector<2x192xf32> to vector<2x32xf32>
    %135 = arith.mulf %124, %134 : vector<2x32xf32>
    %136 = arith.addf %133, %135 : vector<2x32xf32>
    %137 = math.tanh %136 : vector<2x32xf32>
    %cst_28 = arith.constant 1.000000e+00 : f32
    %138 = vector.broadcast %cst_28 : f32 to vector<2x32xf32>
    %139 = arith.subf %138, %132 : vector<2x32xf32>
    %140 = arith.mulf %139, %137 : vector<2x32xf32>
    %141 = arith.mulf %132, %84 : vector<2x32xf32>
    %142 = arith.addf %140, %141 : vector<2x32xf32>
    %143 = vector.extract_strided_slice %8 {offsets = [2, 0], sizes = [2, 1], strides = [1, 1]} : vector<16x1xf32> to vector<2x1xf32>
    %144 = vector.extract_strided_slice %8 {offsets = [12, 0], sizes = [2, 1], strides = [1, 1]} : vector<16x1xf32> to vector<2x1xf32>
    %145 = vector.broadcast %143 : vector<2x1xf32> to vector<2x32xf32>
    %146 = arith.mulf %145, %116 : vector<2x32xf32>
    %cst_29 = arith.constant 1.000000e+00 : f32
    %147 = vector.broadcast %cst_29 : f32 to vector<2x1xf32>
    %148 = arith.subf %147, %143 : vector<2x1xf32>
    %149 = vector.broadcast %148 : vector<2x1xf32> to vector<2x32xf32>
    %150 = arith.mulf %149, %77 : vector<2x32xf32>
    %151 = arith.addf %146, %150 : vector<2x32xf32>
    %152 = vector.broadcast %144 : vector<2x1xf32> to vector<2x32xf32>
    %153 = arith.mulf %152, %142 : vector<2x32xf32>
    %cst_30 = arith.constant 1.000000e+00 : f32
    %154 = vector.broadcast %cst_30 : f32 to vector<2x1xf32>
    %155 = arith.subf %154, %144 : vector<2x1xf32>
    %156 = vector.broadcast %155 : vector<2x1xf32> to vector<2x32xf32>
    %157 = arith.mulf %156, %84 : vector<2x32xf32>
    %158 = arith.addf %153, %157 : vector<2x32xf32>
    %159 = tpu.concatenate %151, %158 in 1 : vector<2x32xf32>, vector<2x32xf32> -> vector<2x64xf32>
    %cst_31 = arith.constant dense<0.000000e+00> : vector<2x192xf32>
    %160 = tpu.matmul %159, %6, %cst_31 {dimension_numbers = #tpu.dot_dimension_numbers<[1], [0], [0], [1], [0, 0, 1, 1], [], []>} : vector<2x64xf32>, vector<64x192xf32>, vector<2x192xf32> -> vector<2x192xf32>
    %161 = vector.broadcast %7 : vector<1x192xf32> to vector<2x192xf32>
    %162 = arith.addf %160, %161 : vector<2x192xf32>
    %163 = vector.extract_strided_slice %5 {offsets = [4, 0], sizes = [2, 192], strides = [1, 1]} : vector<16x192xf32> to vector<2x192xf32>
    %164 = vector.extract_strided_slice %5 {offsets = [10, 0], sizes = [2, 192], strides = [1, 1]} : vector<16x192xf32> to vector<2x192xf32>
    %165 = vector.extract_strided_slice %163 {offsets = [0, 0], sizes = [2, 32], strides = [1, 1]} : vector<2x192xf32> to vector<2x32xf32>
    %166 = vector.extract_strided_slice %162 {offsets = [0, 0], sizes = [2, 32], strides = [1, 1]} : vector<2x192xf32> to vector<2x32xf32>
    %167 = arith.addf %165, %166 : vector<2x32xf32>
    %168 = arith.negf %167 : vector<2x32xf32>
    %169 = math.exp %168 : vector<2x32xf32>
    %cst_32 = arith.constant 1.000000e+00 : f32
    %170 = vector.broadcast %cst_32 : f32 to vector<2x32xf32>
    %171 = arith.addf %170, %169 : vector<2x32xf32>
    %172 = arith.divf %170, %171 : vector<2x32xf32>
    %173 = vector.extract_strided_slice %163 {offsets = [0, 32], sizes = [2, 32], strides = [1, 1]} : vector<2x192xf32> to vector<2x32xf32>
    %174 = vector.extract_strided_slice %162 {offsets = [0, 32], sizes = [2, 32], strides = [1, 1]} : vector<2x192xf32> to vector<2x32xf32>
    %175 = arith.addf %173, %174 : vector<2x32xf32>
    %176 = arith.negf %175 : vector<2x32xf32>
    %177 = math.exp %176 : vector<2x32xf32>
    %cst_33 = arith.constant 1.000000e+00 : f32
    %178 = vector.broadcast %cst_33 : f32 to vector<2x32xf32>
    %179 = arith.addf %178, %177 : vector<2x32xf32>
    %180 = arith.divf %178, %179 : vector<2x32xf32>
    %181 = vector.extract_strided_slice %163 {offsets = [0, 64], sizes = [2, 32], strides = [1, 1]} : vector<2x192xf32> to vector<2x32xf32>
    %182 = vector.extract_strided_slice %162 {offsets = [0, 64], sizes = [2, 32], strides = [1, 1]} : vector<2x192xf32> to vector<2x32xf32>
    %183 = arith.mulf %172, %182 : vector<2x32xf32>
    %184 = arith.addf %181, %183 : vector<2x32xf32>
    %185 = math.tanh %184 : vector<2x32xf32>
    %cst_34 = arith.constant 1.000000e+00 : f32
    %186 = vector.broadcast %cst_34 : f32 to vector<2x32xf32>
    %187 = arith.subf %186, %180 : vector<2x32xf32>
    %188 = arith.mulf %187, %185 : vector<2x32xf32>
    %189 = arith.mulf %180, %151 : vector<2x32xf32>
    %190 = arith.addf %188, %189 : vector<2x32xf32>
    %191 = vector.extract_strided_slice %164 {offsets = [0, 96], sizes = [2, 32], strides = [1, 1]} : vector<2x192xf32> to vector<2x32xf32>
    %192 = vector.extract_strided_slice %162 {offsets = [0, 96], sizes = [2, 32], strides = [1, 1]} : vector<2x192xf32> to vector<2x32xf32>
    %193 = arith.addf %191, %192 : vector<2x32xf32>
    %194 = arith.negf %193 : vector<2x32xf32>
    %195 = math.exp %194 : vector<2x32xf32>
    %cst_35 = arith.constant 1.000000e+00 : f32
    %196 = vector.broadcast %cst_35 : f32 to vector<2x32xf32>
    %197 = arith.addf %196, %195 : vector<2x32xf32>
    %198 = arith.divf %196, %197 : vector<2x32xf32>
    %199 = vector.extract_strided_slice %164 {offsets = [0, 128], sizes = [2, 32], strides = [1, 1]} : vector<2x192xf32> to vector<2x32xf32>
    %200 = vector.extract_strided_slice %162 {offsets = [0, 128], sizes = [2, 32], strides = [1, 1]} : vector<2x192xf32> to vector<2x32xf32>
    %201 = arith.addf %199, %200 : vector<2x32xf32>
    %202 = arith.negf %201 : vector<2x32xf32>
    %203 = math.exp %202 : vector<2x32xf32>
    %cst_36 = arith.constant 1.000000e+00 : f32
    %204 = vector.broadcast %cst_36 : f32 to vector<2x32xf32>
    %205 = arith.addf %204, %203 : vector<2x32xf32>
    %206 = arith.divf %204, %205 : vector<2x32xf32>
    %207 = vector.extract_strided_slice %164 {offsets = [0, 160], sizes = [2, 32], strides = [1, 1]} : vector<2x192xf32> to vector<2x32xf32>
    %208 = vector.extract_strided_slice %162 {offsets = [0, 160], sizes = [2, 32], strides = [1, 1]} : vector<2x192xf32> to vector<2x32xf32>
    %209 = arith.mulf %198, %208 : vector<2x32xf32>
    %210 = arith.addf %207, %209 : vector<2x32xf32>
    %211 = math.tanh %210 : vector<2x32xf32>
    %cst_37 = arith.constant 1.000000e+00 : f32
    %212 = vector.broadcast %cst_37 : f32 to vector<2x32xf32>
    %213 = arith.subf %212, %206 : vector<2x32xf32>
    %214 = arith.mulf %213, %211 : vector<2x32xf32>
    %215 = arith.mulf %206, %158 : vector<2x32xf32>
    %216 = arith.addf %214, %215 : vector<2x32xf32>
    %217 = vector.extract_strided_slice %8 {offsets = [4, 0], sizes = [2, 1], strides = [1, 1]} : vector<16x1xf32> to vector<2x1xf32>
    %218 = vector.extract_strided_slice %8 {offsets = [10, 0], sizes = [2, 1], strides = [1, 1]} : vector<16x1xf32> to vector<2x1xf32>
    %219 = vector.broadcast %217 : vector<2x1xf32> to vector<2x32xf32>
    %220 = arith.mulf %219, %190 : vector<2x32xf32>
    %cst_38 = arith.constant 1.000000e+00 : f32
    %221 = vector.broadcast %cst_38 : f32 to vector<2x1xf32>
    %222 = arith.subf %221, %217 : vector<2x1xf32>
    %223 = vector.broadcast %222 : vector<2x1xf32> to vector<2x32xf32>
    %224 = arith.mulf %223, %151 : vector<2x32xf32>
    %225 = arith.addf %220, %224 : vector<2x32xf32>
    %226 = vector.broadcast %218 : vector<2x1xf32> to vector<2x32xf32>
    %227 = arith.mulf %226, %216 : vector<2x32xf32>
    %cst_39 = arith.constant 1.000000e+00 : f32
    %228 = vector.broadcast %cst_39 : f32 to vector<2x1xf32>
    %229 = arith.subf %228, %218 : vector<2x1xf32>
    %230 = vector.broadcast %229 : vector<2x1xf32> to vector<2x32xf32>
    %231 = arith.mulf %230, %158 : vector<2x32xf32>
    %232 = arith.addf %227, %231 : vector<2x32xf32>
    %233 = tpu.concatenate %225, %232 in 1 : vector<2x32xf32>, vector<2x32xf32> -> vector<2x64xf32>
    %cst_40 = arith.constant dense<0.000000e+00> : vector<2x192xf32>
    %234 = tpu.matmul %233, %6, %cst_40 {dimension_numbers = #tpu.dot_dimension_numbers<[1], [0], [0], [1], [0, 0, 1, 1], [], []>} : vector<2x64xf32>, vector<64x192xf32>, vector<2x192xf32> -> vector<2x192xf32>
    %235 = vector.broadcast %7 : vector<1x192xf32> to vector<2x192xf32>
    %236 = arith.addf %234, %235 : vector<2x192xf32>
    %237 = vector.extract_strided_slice %5 {offsets = [6, 0], sizes = [2, 192], strides = [1, 1]} : vector<16x192xf32> to vector<2x192xf32>
    %238 = vector.extract_strided_slice %5 {offsets = [8, 0], sizes = [2, 192], strides = [1, 1]} : vector<16x192xf32> to vector<2x192xf32>
    %239 = vector.extract_strided_slice %237 {offsets = [0, 0], sizes = [2, 32], strides = [1, 1]} : vector<2x192xf32> to vector<2x32xf32>
    %240 = vector.extract_strided_slice %236 {offsets = [0, 0], sizes = [2, 32], strides = [1, 1]} : vector<2x192xf32> to vector<2x32xf32>
    %241 = arith.addf %239, %240 : vector<2x32xf32>
    %242 = arith.negf %241 : vector<2x32xf32>
    %243 = math.exp %242 : vector<2x32xf32>
    %cst_41 = arith.constant 1.000000e+00 : f32
    %244 = vector.broadcast %cst_41 : f32 to vector<2x32xf32>
    %245 = arith.addf %244, %243 : vector<2x32xf32>
    %246 = arith.divf %244, %245 : vector<2x32xf32>
    %247 = vector.extract_strided_slice %237 {offsets = [0, 32], sizes = [2, 32], strides = [1, 1]} : vector<2x192xf32> to vector<2x32xf32>
    %248 = vector.extract_strided_slice %236 {offsets = [0, 32], sizes = [2, 32], strides = [1, 1]} : vector<2x192xf32> to vector<2x32xf32>
    %249 = arith.addf %247, %248 : vector<2x32xf32>
    %250 = arith.negf %249 : vector<2x32xf32>
    %251 = math.exp %250 : vector<2x32xf32>
    %cst_42 = arith.constant 1.000000e+00 : f32
    %252 = vector.broadcast %cst_42 : f32 to vector<2x32xf32>
    %253 = arith.addf %252, %251 : vector<2x32xf32>
    %254 = arith.divf %252, %253 : vector<2x32xf32>
    %255 = vector.extract_strided_slice %237 {offsets = [0, 64], sizes = [2, 32], strides = [1, 1]} : vector<2x192xf32> to vector<2x32xf32>
    %256 = vector.extract_strided_slice %236 {offsets = [0, 64], sizes = [2, 32], strides = [1, 1]} : vector<2x192xf32> to vector<2x32xf32>
    %257 = arith.mulf %246, %256 : vector<2x32xf32>
    %258 = arith.addf %255, %257 : vector<2x32xf32>
    %259 = math.tanh %258 : vector<2x32xf32>
    %cst_43 = arith.constant 1.000000e+00 : f32
    %260 = vector.broadcast %cst_43 : f32 to vector<2x32xf32>
    %261 = arith.subf %260, %254 : vector<2x32xf32>
    %262 = arith.mulf %261, %259 : vector<2x32xf32>
    %263 = arith.mulf %254, %225 : vector<2x32xf32>
    %264 = arith.addf %262, %263 : vector<2x32xf32>
    %265 = vector.extract_strided_slice %238 {offsets = [0, 96], sizes = [2, 32], strides = [1, 1]} : vector<2x192xf32> to vector<2x32xf32>
    %266 = vector.extract_strided_slice %236 {offsets = [0, 96], sizes = [2, 32], strides = [1, 1]} : vector<2x192xf32> to vector<2x32xf32>
    %267 = arith.addf %265, %266 : vector<2x32xf32>
    %268 = arith.negf %267 : vector<2x32xf32>
    %269 = math.exp %268 : vector<2x32xf32>
    %cst_44 = arith.constant 1.000000e+00 : f32
    %270 = vector.broadcast %cst_44 : f32 to vector<2x32xf32>
    %271 = arith.addf %270, %269 : vector<2x32xf32>
    %272 = arith.divf %270, %271 : vector<2x32xf32>
    %273 = vector.extract_strided_slice %238 {offsets = [0, 128], sizes = [2, 32], strides = [1, 1]} : vector<2x192xf32> to vector<2x32xf32>
    %274 = vector.extract_strided_slice %236 {offsets = [0, 128], sizes = [2, 32], strides = [1, 1]} : vector<2x192xf32> to vector<2x32xf32>
    %275 = arith.addf %273, %274 : vector<2x32xf32>
    %276 = arith.negf %275 : vector<2x32xf32>
    %277 = math.exp %276 : vector<2x32xf32>
    %cst_45 = arith.constant 1.000000e+00 : f32
    %278 = vector.broadcast %cst_45 : f32 to vector<2x32xf32>
    %279 = arith.addf %278, %277 : vector<2x32xf32>
    %280 = arith.divf %278, %279 : vector<2x32xf32>
    %281 = vector.extract_strided_slice %238 {offsets = [0, 160], sizes = [2, 32], strides = [1, 1]} : vector<2x192xf32> to vector<2x32xf32>
    %282 = vector.extract_strided_slice %236 {offsets = [0, 160], sizes = [2, 32], strides = [1, 1]} : vector<2x192xf32> to vector<2x32xf32>
    %283 = arith.mulf %272, %282 : vector<2x32xf32>
    %284 = arith.addf %281, %283 : vector<2x32xf32>
    %285 = math.tanh %284 : vector<2x32xf32>
    %cst_46 = arith.constant 1.000000e+00 : f32
    %286 = vector.broadcast %cst_46 : f32 to vector<2x32xf32>
    %287 = arith.subf %286, %280 : vector<2x32xf32>
    %288 = arith.mulf %287, %285 : vector<2x32xf32>
    %289 = arith.mulf %280, %232 : vector<2x32xf32>
    %290 = arith.addf %288, %289 : vector<2x32xf32>
    %291 = vector.extract_strided_slice %8 {offsets = [6, 0], sizes = [2, 1], strides = [1, 1]} : vector<16x1xf32> to vector<2x1xf32>
    %292 = vector.extract_strided_slice %8 {offsets = [8, 0], sizes = [2, 1], strides = [1, 1]} : vector<16x1xf32> to vector<2x1xf32>
    %293 = vector.broadcast %291 : vector<2x1xf32> to vector<2x32xf32>
    %294 = arith.mulf %293, %264 : vector<2x32xf32>
    %cst_47 = arith.constant 1.000000e+00 : f32
    %295 = vector.broadcast %cst_47 : f32 to vector<2x1xf32>
    %296 = arith.subf %295, %291 : vector<2x1xf32>
    %297 = vector.broadcast %296 : vector<2x1xf32> to vector<2x32xf32>
    %298 = arith.mulf %297, %225 : vector<2x32xf32>
    %299 = arith.addf %294, %298 : vector<2x32xf32>
    %300 = vector.broadcast %292 : vector<2x1xf32> to vector<2x32xf32>
    %301 = arith.mulf %300, %290 : vector<2x32xf32>
    %cst_48 = arith.constant 1.000000e+00 : f32
    %302 = vector.broadcast %cst_48 : f32 to vector<2x1xf32>
    %303 = arith.subf %302, %292 : vector<2x1xf32>
    %304 = vector.broadcast %303 : vector<2x1xf32> to vector<2x32xf32>
    %305 = arith.mulf %304, %232 : vector<2x32xf32>
    %306 = arith.addf %301, %305 : vector<2x32xf32>
    %307 = tpu.concatenate %299, %306 in 1 : vector<2x32xf32>, vector<2x32xf32> -> vector<2x64xf32>
    %cst_49 = arith.constant dense<0.000000e+00> : vector<2x192xf32>
    %308 = tpu.matmul %307, %6, %cst_49 {dimension_numbers = #tpu.dot_dimension_numbers<[1], [0], [0], [1], [0, 0, 1, 1], [], []>} : vector<2x64xf32>, vector<64x192xf32>, vector<2x192xf32> -> vector<2x192xf32>
    %309 = vector.broadcast %7 : vector<1x192xf32> to vector<2x192xf32>
    %310 = arith.addf %308, %309 : vector<2x192xf32>
    %311 = vector.extract_strided_slice %5 {offsets = [8, 0], sizes = [2, 192], strides = [1, 1]} : vector<16x192xf32> to vector<2x192xf32>
    %312 = vector.extract_strided_slice %5 {offsets = [6, 0], sizes = [2, 192], strides = [1, 1]} : vector<16x192xf32> to vector<2x192xf32>
    %313 = vector.extract_strided_slice %311 {offsets = [0, 0], sizes = [2, 32], strides = [1, 1]} : vector<2x192xf32> to vector<2x32xf32>
    %314 = vector.extract_strided_slice %310 {offsets = [0, 0], sizes = [2, 32], strides = [1, 1]} : vector<2x192xf32> to vector<2x32xf32>
    %315 = arith.addf %313, %314 : vector<2x32xf32>
    %316 = arith.negf %315 : vector<2x32xf32>
    %317 = math.exp %316 : vector<2x32xf32>
    %cst_50 = arith.constant 1.000000e+00 : f32
    %318 = vector.broadcast %cst_50 : f32 to vector<2x32xf32>
    %319 = arith.addf %318, %317 : vector<2x32xf32>
    %320 = arith.divf %318, %319 : vector<2x32xf32>
    %321 = vector.extract_strided_slice %311 {offsets = [0, 32], sizes = [2, 32], strides = [1, 1]} : vector<2x192xf32> to vector<2x32xf32>
    %322 = vector.extract_strided_slice %310 {offsets = [0, 32], sizes = [2, 32], strides = [1, 1]} : vector<2x192xf32> to vector<2x32xf32>
    %323 = arith.addf %321, %322 : vector<2x32xf32>
    %324 = arith.negf %323 : vector<2x32xf32>
    %325 = math.exp %324 : vector<2x32xf32>
    %cst_51 = arith.constant 1.000000e+00 : f32
    %326 = vector.broadcast %cst_51 : f32 to vector<2x32xf32>
    %327 = arith.addf %326, %325 : vector<2x32xf32>
    %328 = arith.divf %326, %327 : vector<2x32xf32>
    %329 = vector.extract_strided_slice %311 {offsets = [0, 64], sizes = [2, 32], strides = [1, 1]} : vector<2x192xf32> to vector<2x32xf32>
    %330 = vector.extract_strided_slice %310 {offsets = [0, 64], sizes = [2, 32], strides = [1, 1]} : vector<2x192xf32> to vector<2x32xf32>
    %331 = arith.mulf %320, %330 : vector<2x32xf32>
    %332 = arith.addf %329, %331 : vector<2x32xf32>
    %333 = math.tanh %332 : vector<2x32xf32>
    %cst_52 = arith.constant 1.000000e+00 : f32
    %334 = vector.broadcast %cst_52 : f32 to vector<2x32xf32>
    %335 = arith.subf %334, %328 : vector<2x32xf32>
    %336 = arith.mulf %335, %333 : vector<2x32xf32>
    %337 = arith.mulf %328, %299 : vector<2x32xf32>
    %338 = arith.addf %336, %337 : vector<2x32xf32>
    %339 = vector.extract_strided_slice %312 {offsets = [0, 96], sizes = [2, 32], strides = [1, 1]} : vector<2x192xf32> to vector<2x32xf32>
    %340 = vector.extract_strided_slice %310 {offsets = [0, 96], sizes = [2, 32], strides = [1, 1]} : vector<2x192xf32> to vector<2x32xf32>
    %341 = arith.addf %339, %340 : vector<2x32xf32>
    %342 = arith.negf %341 : vector<2x32xf32>
    %343 = math.exp %342 : vector<2x32xf32>
    %cst_53 = arith.constant 1.000000e+00 : f32
    %344 = vector.broadcast %cst_53 : f32 to vector<2x32xf32>
    %345 = arith.addf %344, %343 : vector<2x32xf32>
    %346 = arith.divf %344, %345 : vector<2x32xf32>
    %347 = vector.extract_strided_slice %312 {offsets = [0, 128], sizes = [2, 32], strides = [1, 1]} : vector<2x192xf32> to vector<2x32xf32>
    %348 = vector.extract_strided_slice %310 {offsets = [0, 128], sizes = [2, 32], strides = [1, 1]} : vector<2x192xf32> to vector<2x32xf32>
    %349 = arith.addf %347, %348 : vector<2x32xf32>
    %350 = arith.negf %349 : vector<2x32xf32>
    %351 = math.exp %350 : vector<2x32xf32>
    %cst_54 = arith.constant 1.000000e+00 : f32
    %352 = vector.broadcast %cst_54 : f32 to vector<2x32xf32>
    %353 = arith.addf %352, %351 : vector<2x32xf32>
    %354 = arith.divf %352, %353 : vector<2x32xf32>
    %355 = vector.extract_strided_slice %312 {offsets = [0, 160], sizes = [2, 32], strides = [1, 1]} : vector<2x192xf32> to vector<2x32xf32>
    %356 = vector.extract_strided_slice %310 {offsets = [0, 160], sizes = [2, 32], strides = [1, 1]} : vector<2x192xf32> to vector<2x32xf32>
    %357 = arith.mulf %346, %356 : vector<2x32xf32>
    %358 = arith.addf %355, %357 : vector<2x32xf32>
    %359 = math.tanh %358 : vector<2x32xf32>
    %cst_55 = arith.constant 1.000000e+00 : f32
    %360 = vector.broadcast %cst_55 : f32 to vector<2x32xf32>
    %361 = arith.subf %360, %354 : vector<2x32xf32>
    %362 = arith.mulf %361, %359 : vector<2x32xf32>
    %363 = arith.mulf %354, %306 : vector<2x32xf32>
    %364 = arith.addf %362, %363 : vector<2x32xf32>
    %365 = vector.extract_strided_slice %8 {offsets = [8, 0], sizes = [2, 1], strides = [1, 1]} : vector<16x1xf32> to vector<2x1xf32>
    %366 = vector.extract_strided_slice %8 {offsets = [6, 0], sizes = [2, 1], strides = [1, 1]} : vector<16x1xf32> to vector<2x1xf32>
    %367 = vector.broadcast %365 : vector<2x1xf32> to vector<2x32xf32>
    %368 = arith.mulf %367, %338 : vector<2x32xf32>
    %cst_56 = arith.constant 1.000000e+00 : f32
    %369 = vector.broadcast %cst_56 : f32 to vector<2x1xf32>
    %370 = arith.subf %369, %365 : vector<2x1xf32>
    %371 = vector.broadcast %370 : vector<2x1xf32> to vector<2x32xf32>
    %372 = arith.mulf %371, %299 : vector<2x32xf32>
    %373 = arith.addf %368, %372 : vector<2x32xf32>
    %374 = vector.broadcast %366 : vector<2x1xf32> to vector<2x32xf32>
    %375 = arith.mulf %374, %364 : vector<2x32xf32>
    %cst_57 = arith.constant 1.000000e+00 : f32
    %376 = vector.broadcast %cst_57 : f32 to vector<2x1xf32>
    %377 = arith.subf %376, %366 : vector<2x1xf32>
    %378 = vector.broadcast %377 : vector<2x1xf32> to vector<2x32xf32>
    %379 = arith.mulf %378, %306 : vector<2x32xf32>
    %380 = arith.addf %375, %379 : vector<2x32xf32>
    %381 = tpu.concatenate %373, %380 in 1 : vector<2x32xf32>, vector<2x32xf32> -> vector<2x64xf32>
    %cst_58 = arith.constant dense<0.000000e+00> : vector<2x192xf32>
    %382 = tpu.matmul %381, %6, %cst_58 {dimension_numbers = #tpu.dot_dimension_numbers<[1], [0], [0], [1], [0, 0, 1, 1], [], []>} : vector<2x64xf32>, vector<64x192xf32>, vector<2x192xf32> -> vector<2x192xf32>
    %383 = vector.broadcast %7 : vector<1x192xf32> to vector<2x192xf32>
    %384 = arith.addf %382, %383 : vector<2x192xf32>
    %385 = vector.extract_strided_slice %5 {offsets = [10, 0], sizes = [2, 192], strides = [1, 1]} : vector<16x192xf32> to vector<2x192xf32>
    %386 = vector.extract_strided_slice %5 {offsets = [4, 0], sizes = [2, 192], strides = [1, 1]} : vector<16x192xf32> to vector<2x192xf32>
    %387 = vector.extract_strided_slice %385 {offsets = [0, 0], sizes = [2, 32], strides = [1, 1]} : vector<2x192xf32> to vector<2x32xf32>
    %388 = vector.extract_strided_slice %384 {offsets = [0, 0], sizes = [2, 32], strides = [1, 1]} : vector<2x192xf32> to vector<2x32xf32>
    %389 = arith.addf %387, %388 : vector<2x32xf32>
    %390 = arith.negf %389 : vector<2x32xf32>
    %391 = math.exp %390 : vector<2x32xf32>
    %cst_59 = arith.constant 1.000000e+00 : f32
    %392 = vector.broadcast %cst_59 : f32 to vector<2x32xf32>
    %393 = arith.addf %392, %391 : vector<2x32xf32>
    %394 = arith.divf %392, %393 : vector<2x32xf32>
    %395 = vector.extract_strided_slice %385 {offsets = [0, 32], sizes = [2, 32], strides = [1, 1]} : vector<2x192xf32> to vector<2x32xf32>
    %396 = vector.extract_strided_slice %384 {offsets = [0, 32], sizes = [2, 32], strides = [1, 1]} : vector<2x192xf32> to vector<2x32xf32>
    %397 = arith.addf %395, %396 : vector<2x32xf32>
    %398 = arith.negf %397 : vector<2x32xf32>
    %399 = math.exp %398 : vector<2x32xf32>
    %cst_60 = arith.constant 1.000000e+00 : f32
    %400 = vector.broadcast %cst_60 : f32 to vector<2x32xf32>
    %401 = arith.addf %400, %399 : vector<2x32xf32>
    %402 = arith.divf %400, %401 : vector<2x32xf32>
    %403 = vector.extract_strided_slice %385 {offsets = [0, 64], sizes = [2, 32], strides = [1, 1]} : vector<2x192xf32> to vector<2x32xf32>
    %404 = vector.extract_strided_slice %384 {offsets = [0, 64], sizes = [2, 32], strides = [1, 1]} : vector<2x192xf32> to vector<2x32xf32>
    %405 = arith.mulf %394, %404 : vector<2x32xf32>
    %406 = arith.addf %403, %405 : vector<2x32xf32>
    %407 = math.tanh %406 : vector<2x32xf32>
    %cst_61 = arith.constant 1.000000e+00 : f32
    %408 = vector.broadcast %cst_61 : f32 to vector<2x32xf32>
    %409 = arith.subf %408, %402 : vector<2x32xf32>
    %410 = arith.mulf %409, %407 : vector<2x32xf32>
    %411 = arith.mulf %402, %373 : vector<2x32xf32>
    %412 = arith.addf %410, %411 : vector<2x32xf32>
    %413 = vector.extract_strided_slice %386 {offsets = [0, 96], sizes = [2, 32], strides = [1, 1]} : vector<2x192xf32> to vector<2x32xf32>
    %414 = vector.extract_strided_slice %384 {offsets = [0, 96], sizes = [2, 32], strides = [1, 1]} : vector<2x192xf32> to vector<2x32xf32>
    %415 = arith.addf %413, %414 : vector<2x32xf32>
    %416 = arith.negf %415 : vector<2x32xf32>
    %417 = math.exp %416 : vector<2x32xf32>
    %cst_62 = arith.constant 1.000000e+00 : f32
    %418 = vector.broadcast %cst_62 : f32 to vector<2x32xf32>
    %419 = arith.addf %418, %417 : vector<2x32xf32>
    %420 = arith.divf %418, %419 : vector<2x32xf32>
    %421 = vector.extract_strided_slice %386 {offsets = [0, 128], sizes = [2, 32], strides = [1, 1]} : vector<2x192xf32> to vector<2x32xf32>
    %422 = vector.extract_strided_slice %384 {offsets = [0, 128], sizes = [2, 32], strides = [1, 1]} : vector<2x192xf32> to vector<2x32xf32>
    %423 = arith.addf %421, %422 : vector<2x32xf32>
    %424 = arith.negf %423 : vector<2x32xf32>
    %425 = math.exp %424 : vector<2x32xf32>
    %cst_63 = arith.constant 1.000000e+00 : f32
    %426 = vector.broadcast %cst_63 : f32 to vector<2x32xf32>
    %427 = arith.addf %426, %425 : vector<2x32xf32>
    %428 = arith.divf %426, %427 : vector<2x32xf32>
    %429 = vector.extract_strided_slice %386 {offsets = [0, 160], sizes = [2, 32], strides = [1, 1]} : vector<2x192xf32> to vector<2x32xf32>
    %430 = vector.extract_strided_slice %384 {offsets = [0, 160], sizes = [2, 32], strides = [1, 1]} : vector<2x192xf32> to vector<2x32xf32>
    %431 = arith.mulf %420, %430 : vector<2x32xf32>
    %432 = arith.addf %429, %431 : vector<2x32xf32>
    %433 = math.tanh %432 : vector<2x32xf32>
    %cst_64 = arith.constant 1.000000e+00 : f32
    %434 = vector.broadcast %cst_64 : f32 to vector<2x32xf32>
    %435 = arith.subf %434, %428 : vector<2x32xf32>
    %436 = arith.mulf %435, %433 : vector<2x32xf32>
    %437 = arith.mulf %428, %380 : vector<2x32xf32>
    %438 = arith.addf %436, %437 : vector<2x32xf32>
    %439 = vector.extract_strided_slice %8 {offsets = [10, 0], sizes = [2, 1], strides = [1, 1]} : vector<16x1xf32> to vector<2x1xf32>
    %440 = vector.extract_strided_slice %8 {offsets = [4, 0], sizes = [2, 1], strides = [1, 1]} : vector<16x1xf32> to vector<2x1xf32>
    %441 = vector.broadcast %439 : vector<2x1xf32> to vector<2x32xf32>
    %442 = arith.mulf %441, %412 : vector<2x32xf32>
    %cst_65 = arith.constant 1.000000e+00 : f32
    %443 = vector.broadcast %cst_65 : f32 to vector<2x1xf32>
    %444 = arith.subf %443, %439 : vector<2x1xf32>
    %445 = vector.broadcast %444 : vector<2x1xf32> to vector<2x32xf32>
    %446 = arith.mulf %445, %373 : vector<2x32xf32>
    %447 = arith.addf %442, %446 : vector<2x32xf32>
    %448 = vector.broadcast %440 : vector<2x1xf32> to vector<2x32xf32>
    %449 = arith.mulf %448, %438 : vector<2x32xf32>
    %cst_66 = arith.constant 1.000000e+00 : f32
    %450 = vector.broadcast %cst_66 : f32 to vector<2x1xf32>
    %451 = arith.subf %450, %440 : vector<2x1xf32>
    %452 = vector.broadcast %451 : vector<2x1xf32> to vector<2x32xf32>
    %453 = arith.mulf %452, %380 : vector<2x32xf32>
    %454 = arith.addf %449, %453 : vector<2x32xf32>
    %455 = tpu.concatenate %447, %454 in 1 : vector<2x32xf32>, vector<2x32xf32> -> vector<2x64xf32>
    %cst_67 = arith.constant dense<0.000000e+00> : vector<2x192xf32>
    %456 = tpu.matmul %455, %6, %cst_67 {dimension_numbers = #tpu.dot_dimension_numbers<[1], [0], [0], [1], [0, 0, 1, 1], [], []>} : vector<2x64xf32>, vector<64x192xf32>, vector<2x192xf32> -> vector<2x192xf32>
    %457 = vector.broadcast %7 : vector<1x192xf32> to vector<2x192xf32>
    %458 = arith.addf %456, %457 : vector<2x192xf32>
    %459 = vector.extract_strided_slice %5 {offsets = [12, 0], sizes = [2, 192], strides = [1, 1]} : vector<16x192xf32> to vector<2x192xf32>
    %460 = vector.extract_strided_slice %5 {offsets = [2, 0], sizes = [2, 192], strides = [1, 1]} : vector<16x192xf32> to vector<2x192xf32>
    %461 = vector.extract_strided_slice %459 {offsets = [0, 0], sizes = [2, 32], strides = [1, 1]} : vector<2x192xf32> to vector<2x32xf32>
    %462 = vector.extract_strided_slice %458 {offsets = [0, 0], sizes = [2, 32], strides = [1, 1]} : vector<2x192xf32> to vector<2x32xf32>
    %463 = arith.addf %461, %462 : vector<2x32xf32>
    %464 = arith.negf %463 : vector<2x32xf32>
    %465 = math.exp %464 : vector<2x32xf32>
    %cst_68 = arith.constant 1.000000e+00 : f32
    %466 = vector.broadcast %cst_68 : f32 to vector<2x32xf32>
    %467 = arith.addf %466, %465 : vector<2x32xf32>
    %468 = arith.divf %466, %467 : vector<2x32xf32>
    %469 = vector.extract_strided_slice %459 {offsets = [0, 32], sizes = [2, 32], strides = [1, 1]} : vector<2x192xf32> to vector<2x32xf32>
    %470 = vector.extract_strided_slice %458 {offsets = [0, 32], sizes = [2, 32], strides = [1, 1]} : vector<2x192xf32> to vector<2x32xf32>
    %471 = arith.addf %469, %470 : vector<2x32xf32>
    %472 = arith.negf %471 : vector<2x32xf32>
    %473 = math.exp %472 : vector<2x32xf32>
    %cst_69 = arith.constant 1.000000e+00 : f32
    %474 = vector.broadcast %cst_69 : f32 to vector<2x32xf32>
    %475 = arith.addf %474, %473 : vector<2x32xf32>
    %476 = arith.divf %474, %475 : vector<2x32xf32>
    %477 = vector.extract_strided_slice %459 {offsets = [0, 64], sizes = [2, 32], strides = [1, 1]} : vector<2x192xf32> to vector<2x32xf32>
    %478 = vector.extract_strided_slice %458 {offsets = [0, 64], sizes = [2, 32], strides = [1, 1]} : vector<2x192xf32> to vector<2x32xf32>
    %479 = arith.mulf %468, %478 : vector<2x32xf32>
    %480 = arith.addf %477, %479 : vector<2x32xf32>
    %481 = math.tanh %480 : vector<2x32xf32>
    %cst_70 = arith.constant 1.000000e+00 : f32
    %482 = vector.broadcast %cst_70 : f32 to vector<2x32xf32>
    %483 = arith.subf %482, %476 : vector<2x32xf32>
    %484 = arith.mulf %483, %481 : vector<2x32xf32>
    %485 = arith.mulf %476, %447 : vector<2x32xf32>
    %486 = arith.addf %484, %485 : vector<2x32xf32>
    %487 = vector.extract_strided_slice %460 {offsets = [0, 96], sizes = [2, 32], strides = [1, 1]} : vector<2x192xf32> to vector<2x32xf32>
    %488 = vector.extract_strided_slice %458 {offsets = [0, 96], sizes = [2, 32], strides = [1, 1]} : vector<2x192xf32> to vector<2x32xf32>
    %489 = arith.addf %487, %488 : vector<2x32xf32>
    %490 = arith.negf %489 : vector<2x32xf32>
    %491 = math.exp %490 : vector<2x32xf32>
    %cst_71 = arith.constant 1.000000e+00 : f32
    %492 = vector.broadcast %cst_71 : f32 to vector<2x32xf32>
    %493 = arith.addf %492, %491 : vector<2x32xf32>
    %494 = arith.divf %492, %493 : vector<2x32xf32>
    %495 = vector.extract_strided_slice %460 {offsets = [0, 128], sizes = [2, 32], strides = [1, 1]} : vector<2x192xf32> to vector<2x32xf32>
    %496 = vector.extract_strided_slice %458 {offsets = [0, 128], sizes = [2, 32], strides = [1, 1]} : vector<2x192xf32> to vector<2x32xf32>
    %497 = arith.addf %495, %496 : vector<2x32xf32>
    %498 = arith.negf %497 : vector<2x32xf32>
    %499 = math.exp %498 : vector<2x32xf32>
    %cst_72 = arith.constant 1.000000e+00 : f32
    %500 = vector.broadcast %cst_72 : f32 to vector<2x32xf32>
    %501 = arith.addf %500, %499 : vector<2x32xf32>
    %502 = arith.divf %500, %501 : vector<2x32xf32>
    %503 = vector.extract_strided_slice %460 {offsets = [0, 160], sizes = [2, 32], strides = [1, 1]} : vector<2x192xf32> to vector<2x32xf32>
    %504 = vector.extract_strided_slice %458 {offsets = [0, 160], sizes = [2, 32], strides = [1, 1]} : vector<2x192xf32> to vector<2x32xf32>
    %505 = arith.mulf %494, %504 : vector<2x32xf32>
    %506 = arith.addf %503, %505 : vector<2x32xf32>
    %507 = math.tanh %506 : vector<2x32xf32>
    %cst_73 = arith.constant 1.000000e+00 : f32
    %508 = vector.broadcast %cst_73 : f32 to vector<2x32xf32>
    %509 = arith.subf %508, %502 : vector<2x32xf32>
    %510 = arith.mulf %509, %507 : vector<2x32xf32>
    %511 = arith.mulf %502, %454 : vector<2x32xf32>
    %512 = arith.addf %510, %511 : vector<2x32xf32>
    %513 = vector.extract_strided_slice %8 {offsets = [12, 0], sizes = [2, 1], strides = [1, 1]} : vector<16x1xf32> to vector<2x1xf32>
    %514 = vector.extract_strided_slice %8 {offsets = [2, 0], sizes = [2, 1], strides = [1, 1]} : vector<16x1xf32> to vector<2x1xf32>
    %515 = vector.broadcast %513 : vector<2x1xf32> to vector<2x32xf32>
    %516 = arith.mulf %515, %486 : vector<2x32xf32>
    %cst_74 = arith.constant 1.000000e+00 : f32
    %517 = vector.broadcast %cst_74 : f32 to vector<2x1xf32>
    %518 = arith.subf %517, %513 : vector<2x1xf32>
    %519 = vector.broadcast %518 : vector<2x1xf32> to vector<2x32xf32>
    %520 = arith.mulf %519, %447 : vector<2x32xf32>
    %521 = arith.addf %516, %520 : vector<2x32xf32>
    %522 = vector.broadcast %514 : vector<2x1xf32> to vector<2x32xf32>
    %523 = arith.mulf %522, %512 : vector<2x32xf32>
    %cst_75 = arith.constant 1.000000e+00 : f32
    %524 = vector.broadcast %cst_75 : f32 to vector<2x1xf32>
    %525 = arith.subf %524, %514 : vector<2x1xf32>
    %526 = vector.broadcast %525 : vector<2x1xf32> to vector<2x32xf32>
    %527 = arith.mulf %526, %454 : vector<2x32xf32>
    %528 = arith.addf %523, %527 : vector<2x32xf32>
    %529 = tpu.concatenate %521, %528 in 1 : vector<2x32xf32>, vector<2x32xf32> -> vector<2x64xf32>
    %cst_76 = arith.constant dense<0.000000e+00> : vector<2x192xf32>
    %530 = tpu.matmul %529, %6, %cst_76 {dimension_numbers = #tpu.dot_dimension_numbers<[1], [0], [0], [1], [0, 0, 1, 1], [], []>} : vector<2x64xf32>, vector<64x192xf32>, vector<2x192xf32> -> vector<2x192xf32>
    %531 = vector.broadcast %7 : vector<1x192xf32> to vector<2x192xf32>
    %532 = arith.addf %530, %531 : vector<2x192xf32>
    %533 = vector.extract_strided_slice %5 {offsets = [14, 0], sizes = [2, 192], strides = [1, 1]} : vector<16x192xf32> to vector<2x192xf32>
    %534 = vector.extract_strided_slice %5 {offsets = [0, 0], sizes = [2, 192], strides = [1, 1]} : vector<16x192xf32> to vector<2x192xf32>
    %535 = vector.extract_strided_slice %533 {offsets = [0, 0], sizes = [2, 32], strides = [1, 1]} : vector<2x192xf32> to vector<2x32xf32>
    %536 = vector.extract_strided_slice %532 {offsets = [0, 0], sizes = [2, 32], strides = [1, 1]} : vector<2x192xf32> to vector<2x32xf32>
    %537 = arith.addf %535, %536 : vector<2x32xf32>
    %538 = arith.negf %537 : vector<2x32xf32>
    %539 = math.exp %538 : vector<2x32xf32>
    %cst_77 = arith.constant 1.000000e+00 : f32
    %540 = vector.broadcast %cst_77 : f32 to vector<2x32xf32>
    %541 = arith.addf %540, %539 : vector<2x32xf32>
    %542 = arith.divf %540, %541 : vector<2x32xf32>
    %543 = vector.extract_strided_slice %533 {offsets = [0, 32], sizes = [2, 32], strides = [1, 1]} : vector<2x192xf32> to vector<2x32xf32>
    %544 = vector.extract_strided_slice %532 {offsets = [0, 32], sizes = [2, 32], strides = [1, 1]} : vector<2x192xf32> to vector<2x32xf32>
    %545 = arith.addf %543, %544 : vector<2x32xf32>
    %546 = arith.negf %545 : vector<2x32xf32>
    %547 = math.exp %546 : vector<2x32xf32>
    %cst_78 = arith.constant 1.000000e+00 : f32
    %548 = vector.broadcast %cst_78 : f32 to vector<2x32xf32>
    %549 = arith.addf %548, %547 : vector<2x32xf32>
    %550 = arith.divf %548, %549 : vector<2x32xf32>
    %551 = vector.extract_strided_slice %533 {offsets = [0, 64], sizes = [2, 32], strides = [1, 1]} : vector<2x192xf32> to vector<2x32xf32>
    %552 = vector.extract_strided_slice %532 {offsets = [0, 64], sizes = [2, 32], strides = [1, 1]} : vector<2x192xf32> to vector<2x32xf32>
    %553 = arith.mulf %542, %552 : vector<2x32xf32>
    %554 = arith.addf %551, %553 : vector<2x32xf32>
    %555 = math.tanh %554 : vector<2x32xf32>
    %cst_79 = arith.constant 1.000000e+00 : f32
    %556 = vector.broadcast %cst_79 : f32 to vector<2x32xf32>
    %557 = arith.subf %556, %550 : vector<2x32xf32>
    %558 = arith.mulf %557, %555 : vector<2x32xf32>
    %559 = arith.mulf %550, %521 : vector<2x32xf32>
    %560 = arith.addf %558, %559 : vector<2x32xf32>
    %561 = vector.extract_strided_slice %534 {offsets = [0, 96], sizes = [2, 32], strides = [1, 1]} : vector<2x192xf32> to vector<2x32xf32>
    %562 = vector.extract_strided_slice %532 {offsets = [0, 96], sizes = [2, 32], strides = [1, 1]} : vector<2x192xf32> to vector<2x32xf32>
    %563 = arith.addf %561, %562 : vector<2x32xf32>
    %564 = arith.negf %563 : vector<2x32xf32>
    %565 = math.exp %564 : vector<2x32xf32>
    %cst_80 = arith.constant 1.000000e+00 : f32
    %566 = vector.broadcast %cst_80 : f32 to vector<2x32xf32>
    %567 = arith.addf %566, %565 : vector<2x32xf32>
    %568 = arith.divf %566, %567 : vector<2x32xf32>
    %569 = vector.extract_strided_slice %534 {offsets = [0, 128], sizes = [2, 32], strides = [1, 1]} : vector<2x192xf32> to vector<2x32xf32>
    %570 = vector.extract_strided_slice %532 {offsets = [0, 128], sizes = [2, 32], strides = [1, 1]} : vector<2x192xf32> to vector<2x32xf32>
    %571 = arith.addf %569, %570 : vector<2x32xf32>
    %572 = arith.negf %571 : vector<2x32xf32>
    %573 = math.exp %572 : vector<2x32xf32>
    %cst_81 = arith.constant 1.000000e+00 : f32
    %574 = vector.broadcast %cst_81 : f32 to vector<2x32xf32>
    %575 = arith.addf %574, %573 : vector<2x32xf32>
    %576 = arith.divf %574, %575 : vector<2x32xf32>
    %577 = vector.extract_strided_slice %534 {offsets = [0, 160], sizes = [2, 32], strides = [1, 1]} : vector<2x192xf32> to vector<2x32xf32>
    %578 = vector.extract_strided_slice %532 {offsets = [0, 160], sizes = [2, 32], strides = [1, 1]} : vector<2x192xf32> to vector<2x32xf32>
    %579 = arith.mulf %568, %578 : vector<2x32xf32>
    %580 = arith.addf %577, %579 : vector<2x32xf32>
    %581 = math.tanh %580 : vector<2x32xf32>
    %cst_82 = arith.constant 1.000000e+00 : f32
    %582 = vector.broadcast %cst_82 : f32 to vector<2x32xf32>
    %583 = arith.subf %582, %576 : vector<2x32xf32>
    %584 = arith.mulf %583, %581 : vector<2x32xf32>
    %585 = arith.mulf %576, %528 : vector<2x32xf32>
    %586 = arith.addf %584, %585 : vector<2x32xf32>
    %587 = vector.extract_strided_slice %8 {offsets = [14, 0], sizes = [2, 1], strides = [1, 1]} : vector<16x1xf32> to vector<2x1xf32>
    %588 = vector.extract_strided_slice %8 {offsets = [0, 0], sizes = [2, 1], strides = [1, 1]} : vector<16x1xf32> to vector<2x1xf32>
    %589 = vector.broadcast %587 : vector<2x1xf32> to vector<2x32xf32>
    %590 = arith.mulf %589, %560 : vector<2x32xf32>
    %cst_83 = arith.constant 1.000000e+00 : f32
    %591 = vector.broadcast %cst_83 : f32 to vector<2x1xf32>
    %592 = arith.subf %591, %587 : vector<2x1xf32>
    %593 = vector.broadcast %592 : vector<2x1xf32> to vector<2x32xf32>
    %594 = arith.mulf %593, %521 : vector<2x32xf32>
    %595 = arith.addf %590, %594 : vector<2x32xf32>
    %596 = vector.broadcast %588 : vector<2x1xf32> to vector<2x32xf32>
    %597 = arith.mulf %596, %586 : vector<2x32xf32>
    %cst_84 = arith.constant 1.000000e+00 : f32
    %598 = vector.broadcast %cst_84 : f32 to vector<2x1xf32>
    %599 = arith.subf %598, %588 : vector<2x1xf32>
    %600 = vector.broadcast %599 : vector<2x1xf32> to vector<2x32xf32>
    %601 = arith.mulf %600, %528 : vector<2x32xf32>
    %602 = arith.addf %597, %601 : vector<2x32xf32>
    %603 = tpu.concatenate %595, %602 in 1 : vector<2x32xf32>, vector<2x32xf32> -> vector<2x64xf32>
    %c0_85 = arith.constant 0 : index
    %c0_86 = arith.constant 0 : index
    %604 = vector.load %arg7[%c0_85, %c0_86] : memref<64x8xf32, #tpu.memory_space<vmem>>, vector<64x8xf32>
    %cst_87 = arith.constant dense<0.000000e+00> : vector<2x8xf32>
    %605 = tpu.matmul %603, %604, %cst_87 {dimension_numbers = #tpu.dot_dimension_numbers<[1], [0], [0], [1], [0, 0, 1, 1], [], []>} : vector<2x64xf32>, vector<64x8xf32>, vector<2x8xf32> -> vector<2x8xf32>
    %c0_88 = arith.constant 0 : index
    %c0_89 = arith.constant 0 : index
    %606 = vector.load %arg8[%c0_88, %c0_89] : memref<1x8xf32, #tpu.memory_space<vmem>>, vector<1x8xf32>
    %607 = vector.broadcast %606 : vector<1x8xf32> to vector<2x8xf32>
    %608 = arith.addf %605, %607 : vector<2x8xf32>
    %c0_90 = arith.constant 0 : index
    %c0_91 = arith.constant 0 : index
    %609 = vector.load %arg9[%c0_90, %c0_91] : memref<2x8xf32, #tpu.memory_space<vmem>>, vector<2x8xf32>
    tpu.vector_store %arg9[%c0_90, %c0_91], %608 {strides = array<i32>} : memref<2x8xf32, #tpu.memory_space<vmem>>, vector<2x8xf32>,
    return
  }
  func.func @transform_0(%arg0: i32) -> (i32, i32) {
    %c0_i32 = arith.constant 0 : i32
    %c0_i32_0 = arith.constant 0 : i32
    %c0_i32_1 = arith.constant 0 : i32
    return %c0_i32, %c0_i32_0 : i32, i32
  }
  func.func @transform_1(%arg0: i32) -> (i32, i32) {
    %c0_i32 = arith.constant 0 : i32
    %c0_i32_0 = arith.constant 0 : i32
    %c0_i32_1 = arith.constant 0 : i32
    return %c0_i32, %c0_i32_0 : i32, i32
  }
  func.func @transform_2(%arg0: i32) -> (i32, i32) {
    %c0_i32 = arith.constant 0 : i32
    %c0_i32_0 = arith.constant 0 : i32
    %c0_i32_1 = arith.constant 0 : i32
    return %c0_i32, %c0_i32_0 : i32, i32
  }
  func.func @transform_3(%arg0: i32) -> (i32, i32) {
    %c0_i32 = arith.constant 0 : i32
    %c0_i32_0 = arith.constant 0 : i32
    %c0_i32_1 = arith.constant 0 : i32
    return %c0_i32, %c0_i32_0 : i32, i32
  }
  func.func @transform_4(%arg0: i32) -> (i32, i32) {
    %c0_i32 = arith.constant 0 : i32
    %c0_i32_0 = arith.constant 0 : i32
    %c0_i32_1 = arith.constant 0 : i32
    return %c0_i32, %c0_i32_0 : i32, i32
  }
  func.func @transform_5(%arg0: i32) -> (i32, i32) {
    %c0_i32 = arith.constant 0 : i32
    %c0_i32_0 = arith.constant 0 : i32
    %c0_i32_1 = arith.constant 0 : i32
    return %c0_i32, %c0_i32_0 : i32, i32
  }
  func.func @transform_6(%arg0: i32) -> (i32, i32) {
    %c0_i32 = arith.constant 0 : i32
    %c0_i32_0 = arith.constant 0 : i32
    %c0_i32_1 = arith.constant 0 : i32
    return %c0_i32, %c0_i32_0 : i32, i32
  }
  func.func @transform_7(%arg0: i32) -> (i32, i32) {
    %c0_i32 = arith.constant 0 : i32
    %c0_i32_0 = arith.constant 0 : i32
    %c0_i32_1 = arith.constant 0 : i32
    return %c0_i32, %c0_i32_0 : i32, i32
  }
  func.func @transform_8(%arg0: i32) -> (i32, i32) {
    %c0_i32 = arith.constant 0 : i32
    %c0_i32_0 = arith.constant 0 : i32
    %c0_i32_1 = arith.constant 0 : i32
    return %c0_i32, %c0_i32_0 : i32, i32
  }
}

</mosaic_0001>

<llo_original>
// kernel: tpu_custom_call.1
$region0: #{tpu_custom_call.1}
  #allocation0 [shape = 'u32[]', space=smem, size = 0x4, offset = 0x4, fixed_abs, tag = 'smem constant byte address 0x4 - core index']
  #allocation1 [shape = 'u32[144,128]{1,0:T(1,128)}', space=vmem, size = 0x12000, scoped, tag = 'internal scratch']
  %s0 = inlined_call_operand.vmem [shape: f32[16,16], index: 0, kind: input, shape index: {}]
  %s1 = inlined_call_operand.vmem [shape: f32[16,1], index: 1, kind: input, shape index: {}]
  %s2 = inlined_call_operand.vmem [shape: f32[16,192], index: 2, kind: input, shape index: {}]
  %s3 = inlined_call_operand.hbm [shape: f32[64,192], index: 3, kind: input, shape index: {}]
  %s4 = inlined_call_operand.vmem [shape: f32[1,192], index: 4, kind: input, shape index: {}]
  %s5 = inlined_call_operand.vmem [shape: f32[1,192], index: 5, kind: input, shape index: {}]
  %s6 = inlined_call_operand.vmem [shape: f32[64,8], index: 6, kind: input, shape index: {}]
  %s7 = inlined_call_operand.vmem [shape: f32[1,8], index: 7, kind: input, shape index: {}]
  %s8 = inlined_call_operand.hbm [shape: f32[2,8], index: 8, kind: output, shape index: {}]
  %s9 = sld [smem:[#allocation0]]
  $region46: #{tpu_custom_call.1} parent=0
    _
  %s11 = ssub.s32 1, %s9
  %s12 = scalar_select 0, %s11, %s9
  $region1: #{tpu_custom_call.1} parent=0
    #allocation2 [shape = 'u8[65536]{0}', space=vmem, size = 0x10000, scoped, tag = 'input window, operand 3, single buffered']
    #allocation3 [shape = 's32[1]{0}', space=sflag, size = 0x4, scoped, tag = 'scoped memory for tpu_custom_call.1']
    #allocation4 [shape = 's32[1]{0}', space=sflag, size = 0x4, scoped, tag = 'scoped memory for tpu_custom_call.1']
    #allocation5 [shape = 'u8[1024]{0}', space=vmem, size = 0x400, scoped, tag = 'output window, operand 0, single buffered']
    %13 = vsyncpa [#allocation3], 0
    %14 = vsyncpa [#allocation4], 0
    // Predicated region
    $region2: #{tpu_custom_call.1} parent=1 // pred_check
      _
    $region3: #{tpu_custom_call.1} parent=1 // pred_check_branch
      %16 = sbr.rel (0) target = $region5
    $region4: #{tpu_custom_call.1} parent=1 // pred_region
      _
    $region5: #{tpu_custom_call.1} parent=1 // pred_fallthru
      _
    // Predicated region
    $region6: #{tpu_custom_call.1} parent=1 // pred_check
      _
    $region7: #{tpu_custom_call.1} parent=1 // pred_check_branch
      %18 = sbr.rel (0) target = $region9
    $region8: #{tpu_custom_call.1} parent=1 // pred_region
      _
    $region9: #{tpu_custom_call.1} parent=1 // pred_fallthru
      _
    // Predicated region
    $region10: #{tpu_custom_call.1} parent=1 // pred_check
      _
    $region11: #{tpu_custom_call.1} parent=1 // pred_check_branch
      %20 = sbr.rel (0) target = $region13
    $region12: #{tpu_custom_call.1} parent=1 // pred_region
      _
    $region13: #{tpu_custom_call.1} parent=1 // pred_fallthru
      _
    // Predicated region
    $region14: #{tpu_custom_call.1} parent=1 // pred_check
      _
    $region15: #{tpu_custom_call.1} parent=1 // pred_check_branch
      %22 = sbr.rel (0) target = $region17
    $region16: #{tpu_custom_call.1} parent=1 // pred_region
      %s24 = ssub.s32 2048, 2048
      %25 = vsyncadd [#allocation3], %s24
      %s26 = sshll.u32 [#allocation2], 4
      %s27 = int_to_ptr.vmem [resolvable:$true] %s26
      %32 = dma.hbm_to_vmem [thread:$0]  %s3, 2048, %s27, [#allocation3], 256, 256, 16
    $region17: #{tpu_custom_call.1} parent=1 // pred_fallthru
      _
    // Predicated region
    $region18: #{tpu_custom_call.1} parent=1 // pred_check
      _
    $region19: #{tpu_custom_call.1} parent=1 // pred_check_branch
      %34 = sbr.rel (0) target = $region21
    $region20: #{tpu_custom_call.1} parent=1 // pred_region
      _
    $region21: #{tpu_custom_call.1} parent=1 // pred_fallthru
      _
    // Predicated region
    $region22: #{tpu_custom_call.1} parent=1 // pred_check
      _
    $region23: #{tpu_custom_call.1} parent=1 // pred_check_branch
      %36 = sbr.rel (0) target = $region25
    $region24: #{tpu_custom_call.1} parent=1 // pred_region
      _
    $region25: #{tpu_custom_call.1} parent=1 // pred_fallthru
      _
    // Predicated region
    $region26: #{tpu_custom_call.1} parent=1 // pred_check
      _
    $region27: #{tpu_custom_call.1} parent=1 // pred_check_branch
      %38 = sbr.rel (0) target = $region29
    $region28: #{tpu_custom_call.1} parent=1 // pred_region
      _
    $region29: #{tpu_custom_call.1} parent=1 // pred_fallthru
      _
    // Predicated region
    $region30: #{tpu_custom_call.1} parent=1 // pred_check
      _
    $region31: #{tpu_custom_call.1} parent=1 // pred_check_branch
      %40 = sbr.rel (0) target = $region33
    $region32: #{tpu_custom_call.1} parent=1 // pred_region
      _
    $region33: #{tpu_custom_call.1} parent=1 // pred_fallthru
      _
    // Predicated region
    $region34: #{tpu_custom_call.1} parent=1 // pred_check
      _
    $region35: #{tpu_custom_call.1} parent=1 // pred_check_branch
      %42 = sbr.rel (0) target = $region37
    $region36: #{tpu_custom_call.1} parent=1 // pred_region
      %43 = dma.done [#allocation3], 2048
    $region37: #{tpu_custom_call.1} parent=1 // pred_fallthru
      _
    %v44 = vld [vmem:[%s0] sm:$0xff]
    %v45 = vld [vmem:[%s0 + $0x8] sm:$0xff]
    %v46 = vld [vmem:[%s2] sm:$0xff]
    %v47 = vld [vmem:[%s2 + $0x8] sm:$0xff]
    %v48 = vld [vmem:[%s2 + $0x10] sm:$0xff]
    %v49 = vld [vmem:[%s2 + $0x18] sm:$0xff]
    %v50 = vld [vmem:[%s4] sm:$0x3]
    %v52 = vlaneseq
    %v53 = vshrl.u32 %v52, 7
    %v54 = vsub.s32 0, %v53
    %v55 = vrot.slane %v50, %v54
    %v56 = vlaneseq
    %v57 = vshrl.u32 %v56, 7
    %v58 = vsub.s32 1, %v57
    %v59 = vrot.slane %v50, %v58
    %vm62 = vcmask 130048
    %v64 = vsel %vm62, %v44, 0
    %v67 = vsel %vm62, %v45, 0
    %69 = vmatprep.subr.mxu0 %v47
    %70 = vmatpush1.msra.mxu0 %v46
    %71 = vmatprep.subr.mxu0 %v49
    %72 = vmatpush1.msra.mxu0 %v48
    %73 = vmatprep.subr.mxu0 0.0
    %74 = vmatpush1.msra.mxu0 0.0
    %75 = vmatprep.subr.mxu0 0.0
    %76 = vmatpush1.msra.mxu0 0.0
    %77 = vmatprep.subr.mxu0 0.0
    %78 = vmatpush1.msra.mxu0 0.0
    %79 = vmatprep.subr.mxu0 0.0
    %80 = vmatpush1.msra.mxu0 0.0
    %81 = vmatprep.subr.mxu0 0.0
    %82 = vmatpush1.msra.mxu0 0.0
    %83 = vmatprep.subr.mxu0 0.0
    %84 = vmatpush1.msra.mxu0 0.0
    %85 = vmatprep.subr.mxu0 0.0
    %86 = vmatpush1.msra.mxu0 0.0
    %87 = vmatprep.subr.mxu0 0.0
    %88 = vmatpush1.msra.mxu0 0.0
    %89 = vmatprep.subr.mxu0 0.0
    %90 = vmatpush1.msra.mxu0 0.0
    %91 = vmatprep.subr.mxu0 0.0
    %92 = vmatpush1.msra.mxu0 0.0
    %93 = vmatprep.subr.mxu0 0.0
    %94 = vmatpush1.msra.mxu0 0.0
    %95 = vmatprep.subr.mxu0 0.0
    %96 = vmatpush1.msra.mxu0 0.0
    %97 = vmatprep.subr.mxu0 0.0
    %98 = vmatpush1.msra.mxu0 0.0
    %99 = vmatprep.subr.mxu0 0.0
    %100 = vmatpush1.msra.mxu0 0.0
    %101 = vmatprep.subr.mxu0 0.0
    %102 = vmatpush1.msra.mxu0 0.0
    %103 = vmatprep.subr.mxu0 0.0
    %104 = vmatpush1.msra.mxu0 0.0
    %105 = vmatprep.subr.mxu0 0.0
    %106 = vmatpush1.msra.mxu0 0.0
    %107 = vmatprep.subr.mxu0 0.0
    %108 = vmatpush1.msra.mxu0 0.0
    %109 = vmatprep.subr.mxu0 0.0
    %110 = vmatpush1.msra.mxu0 0.0
    %111 = vmatprep.subr.mxu0 0.0
    %112 = vmatpush1.msra.mxu0 0.0
    %113 = vmatprep.subr.mxu0 0.0
    %114 = vmatpush1.msra.mxu0 0.0
    %115 = vmatprep.subr.mxu0 0.0
    %116 = vmatpush1.msra.mxu0 0.0
    %117 = vmatprep.subr.mxu0 0.0
    %118 = vmatpush1.msra.mxu0 0.0
    %119 = vmatprep.subr.mxu0 0.0
    %120 = vmatpush1.msra.mxu0 0.0
    %121 = vmatprep.subr.mxu0 0.0
    %122 = vmatpush1.msra.mxu0 0.0
    %123 = vmatprep.subr.mxu0 0.0
    %124 = vmatpush1.msra.mxu0 0.0
    %125 = vmatprep.subr.mxu0 0.0
    %126 = vmatpush1.msra.mxu0 0.0
    %127 = vmatprep.subr.mxu0 0.0
    %128 = vmatpush1.msra.mxu0 0.0
    %129 = vmatprep.subr.mxu0 0.0
    %130 = vmatpush1.msra.mxu0 0.0
    %131 = vmatprep.subr.mxu0 0.0
    %132 = vmatpush1.msra.mxu0 0.0
    %133 = vmatprep.mubr.f32.mxu0 0.0
    %134 = vmatmul.mubr.f32.gmra.mrb[0].mxu0 %v64
    %v135 = vpop.f32.mrb[0].mxu0
    %v136 = vadd.f32 %v55, %v135
    %v137 = vpop.f32.mrb[0].mxu0
    %v138 = vadd.f32 %v59, %v137
    %139 = vmatprep.mubr.f32.mxu0 0.0
    %140 = vmatmul.mubr.f32.gmra.mrb[0].mxu0 %v67
    %v141 = vpop.f32.mrb[0].mxu0
    %v142 = vadd.f32 %v55, %v141
    %v143 = vpop.f32.mrb[0].mxu0
    %v144 = vadd.f32 %v59, %v143
    %145 = vdwg.mxu0
    %v146 = vld [vmem:[#allocation2] sm:$0xff]
    %v147 = vld [vmem:[#allocation2 + $0x8] sm:$0xff]
    %v148 = vld [vmem:[#allocation2 + $0x10] sm:$0xff]
    %v149 = vld [vmem:[#allocation2 + $0x18] sm:$0xff]
    %v150 = vld [vmem:[#allocation2 + $0x20] sm:$0xff]
    %v151 = vld [vmem:[#allocation2 + $0x28] sm:$0xff]
    %v152 = vld [vmem:[#allocation2 + $0x30] sm:$0xff]
    %v153 = vld [vmem:[#allocation2 + $0x38] sm:$0xff]
    %v154 = vld [vmem:[#allocation2 + $0x40] sm:$0xff]
    %v155 = vld [vmem:[#allocation2 + $0x48] sm:$0xff]
    %v156 = vld [vmem:[#allocation2 + $0x50] sm:$0xff]
    %v157 = vld [vmem:[#allocation2 + $0x58] sm:$0xff]
    %v158 = vld [vmem:[#allocation2 + $0x60] sm:$0xff]
    %v159 = vld [vmem:[#allocation2 + $0x68] sm:$0xff]
    %v160 = vld [vmem:[#allocation2 + $0x70] sm:$0xff]
    %v161 = vld [vmem:[#allocation2 + $0x78] sm:$0xff]
    %v162 = vld [vmem:[%s5] sm:$0x3]
    %v163 = vld [vmem:[%s1] sm:$0xff]
    %v164 = vld [vmem:[%s1 + $0x8] sm:$0xff]
    %v166 = vlaneseq
    %v167 = vshrl.u32 %v166, 7
    %v168 = vsub.s32 0, %v167
    %v169 = vrot.slane %v162, %v168
    %v170 = vlaneseq
    %v171 = vshrl.u32 %v170, 7
    %v172 = vsub.s32 1, %v171
    %v173 = vrot.slane %v162, %v172
    %vm176 = vcmask 523264
    %v178 = vsel %vm176, 0.0, 0
    %180 = vmatprep.subr.mxu0 %v147
    %181 = vmatpush1.msra.mxu0 %v146
    %182 = vmatprep.subr.mxu0 %v149
    %183 = vmatpush1.msra.mxu0 %v148
    %184 = vmatprep.subr.mxu0 %v151
    %185 = vmatpush1.msra.mxu0 %v150
    %186 = vmatprep.subr.mxu0 %v153
    %187 = vmatpush1.msra.mxu0 %v152
    %188 = vmatprep.subr.mxu0 %v155
    %189 = vmatpush1.msra.mxu0 %v154
    %190 = vmatprep.subr.mxu0 %v157
    %191 = vmatpush1.msra.mxu0 %v156
    %192 = vmatprep.subr.mxu0 %v159
    %193 = vmatpush1.msra.mxu0 %v158
    %194 = vmatprep.subr.mxu0 %v161
    %195 = vmatpush1.msra.mxu0 %v160
    %196 = vmatprep.subr.mxu0 0.0
    %197 = vmatpush1.msra.mxu0 0.0
    %198 = vmatprep.subr.mxu0 0.0
    %199 = vmatpush1.msra.mxu0 0.0
    %200 = vmatprep.subr.mxu0 0.0
    %201 = vmatpush1.msra.mxu0 0.0
    %202 = vmatprep.subr.mxu0 0.0
    %203 = vmatpush1.msra.mxu0 0.0
    %204 = vmatprep.subr.mxu0 0.0
    %205 = vmatpush1.msra.mxu0 0.0
    %206 = vmatprep.subr.mxu0 0.0
    %207 = vmatpush1.msra.mxu0 0.0
    %208 = vmatprep.subr.mxu0 0.0
    %209 = vmatpush1.msra.mxu0 0.0
    %210 = vmatprep.subr.mxu0 0.0
    %211 = vmatpush1.msra.mxu0 0.0
    %212 = vmatprep.subr.mxu0 0.0
    %213 = vmatpush1.msra.mxu0 0.0
    %214 = vmatprep.subr.mxu0 0.0
    %215 = vmatpush1.msra.mxu0 0.0
    %216 = vmatprep.subr.mxu0 0.0
    %217 = vmatpush1.msra.mxu0 0.0
    %218 = vmatprep.subr.mxu0 0.0
    %219 = vmatpush1.msra.mxu0 0.0
    %220 = vmatprep.subr.mxu0 0.0
    %221 = vmatpush1.msra.mxu0 0.0
    %222 = vmatprep.subr.mxu0 0.0
    %223 = vmatpush1.msra.mxu0 0.0
    %224 = vmatprep.subr.mxu0 0.0
    %225 = vmatpush1.msra.mxu0 0.0
    %226 = vmatprep.subr.mxu0 0.0
    %227 = vmatpush1.msra.mxu0 0.0
    %228 = vmatprep.subr.mxu0 0.0
    %229 = vmatpush1.msra.mxu0 0.0
    %230 = vmatprep.subr.mxu0 0.0
    %231 = vmatpush1.msra.mxu0 0.0
    %232 = vmatprep.subr.mxu0 0.0
    %233 = vmatpush1.msra.mxu0 0.0
    %234 = vmatprep.subr.mxu0 0.0
    %235 = vmatpush1.msra.mxu0 0.0
    %236 = vmatprep.subr.mxu0 0.0
    %237 = vmatpush1.msra.mxu0 0.0
    %238 = vmatprep.subr.mxu0 0.0
    %239 = vmatpush1.msra.mxu0 0.0
    %240 = vmatprep.subr.mxu0 0.0
    %241 = vmatpush1.msra.mxu0 0.0
    %242 = vmatprep.subr.mxu0 0.0
    %243 = vmatpush1.msra.mxu0 0.0
    %244 = vmatprep.mubr.f32.mxu0 0.0
    %245 = vmatmul.mubr.f32.gmra.mrb[0].mxu0 %v178
    %v246 = vpop.f32.mrb[0].mxu0
    %v247 = vadd.f32 %v169, %v246
    %v248 = vpop.f32.mrb[0].mxu0
    %v249 = vadd.f32 %v173, %v248
    %250 = vdwg.mxu0
    %v251 = vadd.f32 %v136, %v247
    %v252 = vxor.u32 %v251, 2147483648
    %v253 = vmul.f32 %v252, 1.442695
    %v254 = vpow.pop %v253
    %v255 = vadd.f32 %v254, 1.0
    %v256 = vrcp.pop %v255
    %v257 = vmul.f32 1.0, %v256
    %259 = vrot.lane.b32.xlu0 %v247, 64
    %v260 = vpop.permute.xlu0 %259
    %v262 = vmul.f32 %v257, %v260
    %264 = vrot.lane.b32.xlu0 %v262, 64
    %v265 = vpop.permute.xlu0 %264
    %v267 = vadd.f32 %v136, %v265
    %v268 = vtanh.pop %v267
    %v269 = vsub.f32 1.0, %v257
    %271 = vrot.lane.b32.xlu0 %v268, 96
    %v272 = vpop.permute.xlu0 %271
    %v274 = vmul.f32 %v269, %v272
    %v275 = vmul.f32 %v257, 0.0
    %v276 = vadd.f32 %v274, %v275
    %v277 = vrot.slane %v247, 2
    %v279 = vadd.f32 %v142, %v277
    %v280 = vxor.u32 %v279, 2147483648
    %v281 = vmul.f32 %v280, 1.442695
    %v282 = vpow.pop %v281
    %v283 = vadd.f32 %v282, 1.0
    %v284 = vrcp.pop %v283
    %v285 = vmul.f32 1.0, %v284
    %v287 = vrot.slane %v249, 2
    %v289 = vadd.f32 %v144, %v287
    %v290 = vxor.u32 %v289, 2147483648
    %v291 = vmul.f32 %v290, 1.442695
    %v292 = vpow.pop %v291
    %v293 = vadd.f32 %v292, 1.0
    %v294 = vrcp.pop %v293
    %v295 = vmul.f32 1.0, %v294
    %296 = vrot.lane.b32.xlu0 %v287, 64
    %v297 = vpop.permute.xlu0 %296
    %v299 = vmul.f32 %v285, %v297
    %301 = vrot.lane.b32.xlu0 %v299, 64
    %v302 = vpop.permute.xlu0 %301
    %v304 = vadd.f32 %v144, %v302
    %v305 = vtanh.pop %v304
    %v306 = vsub.f32 1.0, %v295
    %308 = vrot.lane.b32.xlu0 %v305, 96
    %v309 = vpop.permute.xlu0 %308
    %v311 = vmul.f32 %v306, %v309
    %v312 = vmul.f32 %v295, 0.0
    %v313 = vadd.f32 %v311, %v312
    %315 = vset.pattern.permute.xlu0 0
    %316 = vperm.xlu0 %315, %v163
    %v317 = vpop.permute.xlu0 %316
    %v319 = vmul.f32 %v317, %v276
    %v320 = vsub.f32 1.0, %v163
    %322 = vset.pattern.permute.xlu0 0
    %323 = vperm.xlu0 %322, %v320
    %v324 = vpop.permute.xlu0 %323
    %v326 = vmul.f32 %v324, 0.0
    %v327 = vadd.f32 %v319, %v326
    %329 = vset.pattern.permute.xlu0 0
    %330 = vperm.xlu0 %329, %v164
    %v331 = vpop.permute.xlu0 %330
    %v333 = vmul.f32 %v331, %v313
    %v334 = vsub.f32 1.0, %v164
    %336 = vset.pattern.permute.xlu0 0
    %337 = vperm.xlu0 %336, %v334
    %v338 = vpop.permute.xlu0 %337
    %v340 = vmul.f32 %v338, 0.0
    %v341 = vadd.f32 %v333, %v340
    %343 = vrot.lane.b32.xlu0 %v327, 96
    %v344 = vpop.permute.xlu0 %343
    %v347 = vrot.slane %v341, 6
    %348 = vrot.lane.b32.xlu0 %v347, 32
    %v349 = vpop.permute.xlu0 %348
    %vm351 = vcmask 261120
    %v352 = vsel %vm351, %v344, %v349
    %v354 = vsel %vm176, %v352, 0
    %356 = vmatprep.subr.mxu0 %v147
    %357 = vmatpush1.msra.mxu0 %v146
    %358 = vmatprep.subr.mxu0 %v149
    %359 = vmatpush1.msra.mxu0 %v148
    %360 = vmatprep.subr.mxu0 %v151
    %361 = vmatpush1.msra.mxu0 %v150
    %362 = vmatprep.subr.mxu0 %v153
    %363 = vmatpush1.msra.mxu0 %v152
    %364 = vmatprep.subr.mxu0 %v155
    %365 = vmatpush1.msra.mxu0 %v154
    %366 = vmatprep.subr.mxu0 %v157
    %367 = vmatpush1.msra.mxu0 %v156
    %368 = vmatprep.subr.mxu0 %v159
    %369 = vmatpush1.msra.mxu0 %v158
    %370 = vmatprep.subr.mxu0 %v161
    %371 = vmatpush1.msra.mxu0 %v160
    %372 = vmatprep.subr.mxu0 0.0
    %373 = vmatpush1.msra.mxu0 0.0
    %374 = vmatprep.subr.mxu0 0.0
    %375 = vmatpush1.msra.mxu0 0.0
    %376 = vmatprep.subr.mxu0 0.0
    %377 = vmatpush1.msra.mxu0 0.0
    %378 = vmatprep.subr.mxu0 0.0
    %379 = vmatpush1.msra.mxu0 0.0
    %380 = vmatprep.subr.mxu0 0.0
    %381 = vmatpush1.msra.mxu0 0.0
    %382 = vmatprep.subr.mxu0 0.0
    %383 = vmatpush1.msra.mxu0 0.0
    %384 = vmatprep.subr.mxu0 0.0
    %385 = vmatpush1.msra.mxu0 0.0
    %386 = vmatprep.subr.mxu0 0.0
    %387 = vmatpush1.msra.mxu0 0.0
    %388 = vmatprep.subr.mxu0 0.0
    %389 = vmatpush1.msra.mxu0 0.0
    %390 = vmatprep.subr.mxu0 0.0
    %391 = vmatpush1.msra.mxu0 0.0
    %392 = vmatprep.subr.mxu0 0.0
    %393 = vmatpush1.msra.mxu0 0.0
    %394 = vmatprep.subr.mxu0 0.0
    %395 = vmatpush1.msra.mxu0 0.0
    %396 = vmatprep.subr.mxu0 0.0
    %397 = vmatpush1.msra.mxu0 0.0
    %398 = vmatprep.subr.mxu0 0.0
    %399 = vmatpush1.msra.mxu0 0.0
    %400 = vmatprep.subr.mxu0 0.0
    %401 = vmatpush1.msra.mxu0 0.0
    %402 = vmatprep.subr.mxu0 0.0
    %403 = vmatpush1.msra.mxu0 0.0
    %404 = vmatprep.subr.mxu0 0.0
    %405 = vmatpush1.msra.mxu0 0.0
    %406 = vmatprep.subr.mxu0 0.0
    %407 = vmatpush1.msra.mxu0 0.0
    %408 = vmatprep.subr.mxu0 0.0
    %409 = vmatpush1.msra.mxu0 0.0
    %410 = vmatprep.subr.mxu0 0.0
    %411 = vmatpush1.msra.mxu0 0.0
    %412 = vmatprep.subr.mxu0 0.0
    %413 = vmatpush1.msra.mxu0 0.0
    %414 = vmatprep.subr.mxu0 0.0
    %415 = vmatpush1.msra.mxu0 0.0
    %416 = vmatprep.subr.mxu0 0.0
    %417 = vmatpush1.msra.mxu0 0.0
    %418 = vmatprep.subr.mxu0 0.0
    %419 = vmatpush1.msra.mxu0 0.0
    %420 = vmatprep.mubr.f32.mxu0 0.0
    %421 = vmatmul.mubr.f32.gmra.mrb[0].mxu0 %v354
    %v422 = vpop.f32.mrb[0].mxu0
    %v423 = vadd.f32 %v169, %v422
    %v424 = vpop.f32.mrb[0].mxu0
    %v425 = vadd.f32 %v173, %v424
    %426 = vdwg.mxu0
    %v428 = vrot.slane %v423, 6
    %v430 = vadd.f32 %v136, %v428
    %v431 = vxor.u32 %v430, 2147483648
    %v432 = vmul.f32 %v431, 1.442695
    %v433 = vpow.pop %v432
    %v434 = vadd.f32 %v433, 1.0
    %v435 = vrcp.pop %v434
    %v436 = vmul.f32 1.0, %v435
    %437 = vrot.lane.b32.xlu0 %v428, 64
    %v438 = vpop.permute.xlu0 %437
    %v440 = vmul.f32 %v436, %v438
    %442 = vrot.lane.b32.xlu0 %v440, 64
    %v443 = vpop.permute.xlu0 %442
    %v445 = vadd.f32 %v136, %v443
    %v446 = vtanh.pop %v445
    %v447 = vsub.f32 1.0, %v436
    %449 = vrot.lane.b32.xlu0 %v446, 96
    %v450 = vpop.permute.xlu0 %449
    %v452 = vmul.f32 %v447, %v450
    %v453 = vrot.slane %v327, 6
    %v455 = vmul.f32 %v436, %v453
    %v456 = vadd.f32 %v452, %v455
    %v457 = vrot.slane %v423, 4
    %v459 = vadd.f32 %v142, %v457
    %v460 = vxor.u32 %v459, 2147483648
    %v461 = vmul.f32 %v460, 1.442695
    %v462 = vpow.pop %v461
    %v463 = vadd.f32 %v462, 1.0
    %v464 = vrcp.pop %v463
    %v465 = vmul.f32 1.0, %v464
    %v467 = vrot.slane %v425, 4
    %v469 = vadd.f32 %v144, %v467
    %v470 = vxor.u32 %v469, 2147483648
    %v471 = vmul.f32 %v470, 1.442695
    %v472 = vpow.pop %v471
    %v473 = vadd.f32 %v472, 1.0
    %v474 = vrcp.pop %v473
    %v475 = vmul.f32 1.0, %v474
    %476 = vrot.lane.b32.xlu0 %v467, 64
    %v477 = vpop.permute.xlu0 %476
    %v479 = vmul.f32 %v465, %v477
    %481 = vrot.lane.b32.xlu0 %v479, 64
    %v482 = vpop.permute.xlu0 %481
    %v484 = vadd.f32 %v144, %v482
    %v485 = vtanh.pop %v484
    %v486 = vsub.f32 1.0, %v475
    %488 = vrot.lane.b32.xlu0 %v485, 96
    %v489 = vpop.permute.xlu0 %488
    %v491 = vmul.f32 %v486, %v489
    %v492 = vrot.slane %v341, 2
    %v494 = vmul.f32 %v475, %v492
    %v495 = vadd.f32 %v491, %v494
    %v496 = vmul.f32 %v317, %v456
    %497 = vrot.lane.b32.xlu0 %v453, 96
    %v498 = vpop.permute.xlu0 %497
    %v500 = vmul.f32 %v324, %v498
    %502 = vrot.lane.b32.xlu0 %v500, 32
    %v503 = vpop.permute.xlu0 %502
    %v505 = vadd.f32 %v496, %v503
    %v506 = vmul.f32 %v331, %v495
    %v507 = vmul.f32 %v338, %v492
    %v508 = vadd.f32 %v506, %v507
    %510 = vrot.lane.b32.xlu0 %v505, 96
    %v511 = vpop.permute.xlu0 %510
    %v514 = vrot.slane %v508, 2
    %515 = vrot.lane.b32.xlu0 %v514, 32
    %v516 = vpop.permute.xlu0 %515
    %v518 = vsel %vm351, %v511, %v516
    %v520 = vrot.slane %v518, 2
    %v521 = vsel %vm176, %v520, 0
    %523 = vmatprep.subr.mxu0 %v147
    %524 = vmatpush1.msra.mxu0 %v146
    %525 = vmatprep.subr.mxu0 %v149
    %526 = vmatpush1.msra.mxu0 %v148
    %527 = vmatprep.subr.mxu0 %v151
    %528 = vmatpush1.msra.mxu0 %v150
    %529 = vmatprep.subr.mxu0 %v153
    %530 = vmatpush1.msra.mxu0 %v152
    %531 = vmatprep.subr.mxu0 %v155
    %532 = vmatpush1.msra.mxu0 %v154
    %533 = vmatprep.subr.mxu0 %v157
    %534 = vmatpush1.msra.mxu0 %v156
    %535 = vmatprep.subr.mxu0 %v159
    %536 = vmatpush1.msra.mxu0 %v158
    %537 = vmatprep.subr.mxu0 %v161
    %538 = vmatpush1.msra.mxu0 %v160
    %539 = vmatprep.subr.mxu0 0.0
    %540 = vmatpush1.msra.mxu0 0.0
    %541 = vmatprep.subr.mxu0 0.0
    %542 = vmatpush1.msra.mxu0 0.0
    %543 = vmatprep.subr.mxu0 0.0
    %544 = vmatpush1.msra.mxu0 0.0
    %545 = vmatprep.subr.mxu0 0.0
    %546 = vmatpush1.msra.mxu0 0.0
    %547 = vmatprep.subr.mxu0 0.0
    %548 = vmatpush1.msra.mxu0 0.0
    %549 = vmatprep.subr.mxu0 0.0
    %550 = vmatpush1.msra.mxu0 0.0
    %551 = vmatprep.subr.mxu0 0.0
    %552 = vmatpush1.msra.mxu0 0.0
    %553 = vmatprep.subr.mxu0 0.0
    %554 = vmatpush1.msra.mxu0 0.0
    %555 = vmatprep.subr.mxu0 0.0
    %556 = vmatpush1.msra.mxu0 0.0
    %557 = vmatprep.subr.mxu0 0.0
    %558 = vmatpush1.msra.mxu0 0.0
    %559 = vmatprep.subr.mxu0 0.0
    %560 = vmatpush1.msra.mxu0 0.0
    %561 = vmatprep.subr.mxu0 0.0
    %562 = vmatpush1.msra.mxu0 0.0
    %563 = vmatprep.subr.mxu0 0.0
    %564 = vmatpush1.msra.mxu0 0.0
    %565 = vmatprep.subr.mxu0 0.0
    %566 = vmatpush1.msra.mxu0 0.0
    %567 = vmatprep.subr.mxu0 0.0
    %568 = vmatpush1.msra.mxu0 0.0
    %569 = vmatprep.subr.mxu0 0.0
    %570 = vmatpush1.msra.mxu0 0.0
    %571 = vmatprep.subr.mxu0 0.0
    %572 = vmatpush1.msra.mxu0 0.0
    %573 = vmatprep.subr.mxu0 0.0
    %574 = vmatpush1.msra.mxu0 0.0
    %575 = vmatprep.subr.mxu0 0.0
    %576 = vmatpush1.msra.mxu0 0.0
    %577 = vmatprep.subr.mxu0 0.0
    %578 = vmatpush1.msra.mxu0 0.0
    %579 = vmatprep.subr.mxu0 0.0
    %580 = vmatpush1.msra.mxu0 0.0
    %581 = vmatprep.subr.mxu0 0.0
    %582 = vmatpush1.msra.mxu0 0.0
    %583 = vmatprep.subr.mxu0 0.0
    %584 = vmatpush1.msra.mxu0 0.0
    %585 = vmatprep.subr.mxu0 0.0
    %586 = vmatpush1.msra.mxu0 0.0
    %587 = vmatprep.mubr.f32.mxu0 0.0
    %588 = vmatmul.mubr.f32.gmra.mrb[0].mxu0 %v521
    %v589 = vpop.f32.mrb[0].mxu0
    %v590 = vadd.f32 %v169, %v589
    %v591 = vpop.f32.mrb[0].mxu0
    %v592 = vadd.f32 %v173, %v591
    %593 = vdwg.mxu0
    %v595 = vrot.slane %v590, 4
    %v597 = vadd.f32 %v136, %v595
    %v598 = vxor.u32 %v597, 2147483648
    %v599 = vmul.f32 %v598, 1.442695
    %v600 = vpow.pop %v599
    %v601 = vadd.f32 %v600, 1.0
    %v602 = vrcp.pop %v601
    %v603 = vmul.f32 1.0, %v602
    %604 = vrot.lane.b32.xlu0 %v595, 64
    %v605 = vpop.permute.xlu0 %604
    %v607 = vmul.f32 %v603, %v605
    %609 = vrot.lane.b32.xlu0 %v607, 64
    %v610 = vpop.permute.xlu0 %609
    %v612 = vadd.f32 %v136, %v610
    %v613 = vtanh.pop %v612
    %v614 = vsub.f32 1.0, %v603
    %616 = vrot.lane.b32.xlu0 %v613, 96
    %v617 = vpop.permute.xlu0 %616
    %v619 = vmul.f32 %v614, %v617
    %v620 = vrot.slane %v505, 6
    %v622 = vmul.f32 %v603, %v620
    %v623 = vadd.f32 %v619, %v622
    %v624 = vrot.slane %v590, 6
    %v626 = vadd.f32 %v142, %v624
    %v627 = vxor.u32 %v626, 2147483648
    %v628 = vmul.f32 %v627, 1.442695
    %v629 = vpow.pop %v628
    %v630 = vadd.f32 %v629, 1.0
    %v631 = vrcp.pop %v630
    %v632 = vmul.f32 1.0, %v631
    %v634 = vrot.slane %v592, 6
    %v636 = vadd.f32 %v144, %v634
    %v637 = vxor.u32 %v636, 2147483648
    %v638 = vmul.f32 %v637, 1.442695
    %v639 = vpow.pop %v638
    %v640 = vadd.f32 %v639, 1.0
    %v641 = vrcp.pop %v640
    %v642 = vmul.f32 1.0, %v641
    %643 = vrot.lane.b32.xlu0 %v634, 64
    %v644 = vpop.permute.xlu0 %643
    %v646 = vmul.f32 %v632, %v644
    %648 = vrot.lane.b32.xlu0 %v646, 64
    %v649 = vpop.permute.xlu0 %648
    %v651 = vadd.f32 %v144, %v649
    %v652 = vtanh.pop %v651
    %v653 = vsub.f32 1.0, %v642
    %655 = vrot.lane.b32.xlu0 %v652, 96
    %v656 = vpop.permute.xlu0 %655
    %v658 = vmul.f32 %v653, %v656
    %v660 = vmul.f32 %v642, %v514
    %v661 = vadd.f32 %v658, %v660
    %v662 = vmul.f32 %v317, %v623
    %663 = vrot.lane.b32.xlu0 %v620, 96
    %v664 = vpop.permute.xlu0 %663
    %v666 = vmul.f32 %v324, %v664
    %668 = vrot.lane.b32.xlu0 %v666, 32
    %v669 = vpop.permute.xlu0 %668
    %v671 = vadd.f32 %v662, %v669
    %v672 = vmul.f32 %v331, %v661
    %v673 = vmul.f32 %v338, %v514
    %v674 = vadd.f32 %v672, %v673
    %676 = vrot.lane.b32.xlu0 %v671, 96
    %v677 = vpop.permute.xlu0 %676
    %v680 = vrot.slane %v674, 6
    %681 = vrot.lane.b32.xlu0 %v680, 32
    %v682 = vpop.permute.xlu0 %681
    %v684 = vsel %vm351, %v677, %v682
    %v686 = vrot.slane %v684, 4
    %v687 = vsel %vm176, %v686, 0
    %689 = vmatprep.subr.mxu0 %v147
    %690 = vmatpush1.msra.mxu0 %v146
    %691 = vmatprep.subr.mxu0 %v149
    %692 = vmatpush1.msra.mxu0 %v148
    %693 = vmatprep.subr.mxu0 %v151
    %694 = vmatpush1.msra.mxu0 %v150
    %695 = vmatprep.subr.mxu0 %v153
    %696 = vmatpush1.msra.mxu0 %v152
    %697 = vmatprep.subr.mxu0 %v155
    %698 = vmatpush1.msra.mxu0 %v154
    %699 = vmatprep.subr.mxu0 %v157
    %700 = vmatpush1.msra.mxu0 %v156
    %701 = vmatprep.subr.mxu0 %v159
    %702 = vmatpush1.msra.mxu0 %v158
    %703 = vmatprep.subr.mxu0 %v161
    %704 = vmatpush1.msra.mxu0 %v160
    %705 = vmatprep.subr.mxu0 0.0
    %706 = vmatpush1.msra.mxu0 0.0
    %707 = vmatprep.subr.mxu0 0.0
    %708 = vmatpush1.msra.mxu0 0.0
    %709 = vmatprep.subr.mxu0 0.0
    %710 = vmatpush1.msra.mxu0 0.0
    %711 = vmatprep.subr.mxu0 0.0
    %712 = vmatpush1.msra.mxu0 0.0
    %713 = vmatprep.subr.mxu0 0.0
    %714 = vmatpush1.msra.mxu0 0.0
    %715 = vmatprep.subr.mxu0 0.0
    %716 = vmatpush1.msra.mxu0 0.0
    %717 = vmatprep.subr.mxu0 0.0
    %718 = vmatpush1.msra.mxu0 0.0
    %719 = vmatprep.subr.mxu0 0.0
    %720 = vmatpush1.msra.mxu0 0.0
    %721 = vmatprep.subr.mxu0 0.0
    %722 = vmatpush1.msra.mxu0 0.0
    %723 = vmatprep.subr.mxu0 0.0
    %724 = vmatpush1.msra.mxu0 0.0
    %725 = vmatprep.subr.mxu0 0.0
    %726 = vmatpush1.msra.mxu0 0.0
    %727 = vmatprep.subr.mxu0 0.0
    %728 = vmatpush1.msra.mxu0 0.0
    %729 = vmatprep.subr.mxu0 0.0
    %730 = vmatpush1.msra.mxu0 0.0
    %731 = vmatprep.subr.mxu0 0.0
    %732 = vmatpush1.msra.mxu0 0.0
    %733 = vmatprep.subr.mxu0 0.0
    %734 = vmatpush1.msra.mxu0 0.0
    %735 = vmatprep.subr.mxu0 0.0
    %736 = vmatpush1.msra.mxu0 0.0
    %737 = vmatprep.subr.mxu0 0.0
    %738 = vmatpush1.msra.mxu0 0.0
    %739 = vmatprep.subr.mxu0 0.0
    %740 = vmatpush1.msra.mxu0 0.0
    %741 = vmatprep.subr.mxu0 0.0
    %742 = vmatpush1.msra.mxu0 0.0
    %743 = vmatprep.subr.mxu0 0.0
    %744 = vmatpush1.msra.mxu0 0.0
    %745 = vmatprep.subr.mxu0 0.0
    %746 = vmatpush1.msra.mxu0 0.0
    %747 = vmatprep.subr.mxu0 0.0
    %748 = vmatpush1.msra.mxu0 0.0
    %749 = vmatprep.subr.mxu0 0.0
    %750 = vmatpush1.msra.mxu0 0.0
    %751 = vmatprep.subr.mxu0 0.0
    %752 = vmatpush1.msra.mxu0 0.0
    %753 = vmatprep.mubr.f32.mxu0 0.0
    %754 = vmatmul.mubr.f32.gmra.mrb[0].mxu0 %v687
    %v755 = vpop.f32.mrb[0].mxu0
    %v756 = vadd.f32 %v169, %v755
    %v757 = vpop.f32.mrb[0].mxu0
    %v758 = vadd.f32 %v173, %v757
    %759 = vdwg.mxu0
    %v761 = vrot.slane %v756, 2
    %v763 = vadd.f32 %v136, %v761
    %v764 = vxor.u32 %v763, 2147483648
    %v765 = vmul.f32 %v764, 1.442695
    %v766 = vpow.pop %v765
    %v767 = vadd.f32 %v766, 1.0
    %v768 = vrcp.pop %v767
    %v769 = vmul.f32 1.0, %v768
    %770 = vrot.lane.b32.xlu0 %v761, 64
    %v771 = vpop.permute.xlu0 %770
    %v773 = vmul.f32 %v769, %v771
    %775 = vrot.lane.b32.xlu0 %v773, 64
    %v776 = vpop.permute.xlu0 %775
    %v778 = vadd.f32 %v136, %v776
    %v779 = vtanh.pop %v778
    %v780 = vsub.f32 1.0, %v769
    %782 = vrot.lane.b32.xlu0 %v779, 96
    %v783 = vpop.permute.xlu0 %782
    %v785 = vmul.f32 %v780, %v783
    %v786 = vrot.slane %v671, 6
    %v788 = vmul.f32 %v769, %v786
    %v789 = vadd.f32 %v785, %v788
    %v790 = vadd.f32 %v142, %v756
    %v791 = vxor.u32 %v790, 2147483648
    %v792 = vmul.f32 %v791, 1.442695
    %v793 = vpow.pop %v792
    %v794 = vadd.f32 %v793, 1.0
    %v795 = vrcp.pop %v794
    %v796 = vmul.f32 1.0, %v795
    %v797 = vadd.f32 %v144, %v758
    %v798 = vxor.u32 %v797, 2147483648
    %v799 = vmul.f32 %v798, 1.442695
    %v800 = vpow.pop %v799
    %v801 = vadd.f32 %v800, 1.0
    %v802 = vrcp.pop %v801
    %v803 = vmul.f32 1.0, %v802
    %805 = vrot.lane.b32.xlu0 %v758, 64
    %v806 = vpop.permute.xlu0 %805
    %v808 = vmul.f32 %v796, %v806
    %810 = vrot.lane.b32.xlu0 %v808, 64
    %v811 = vpop.permute.xlu0 %810
    %v813 = vadd.f32 %v144, %v811
    %v814 = vtanh.pop %v813
    %v815 = vsub.f32 1.0, %v803
    %817 = vrot.lane.b32.xlu0 %v814, 96
    %v818 = vpop.permute.xlu0 %817
    %v820 = vmul.f32 %v815, %v818
    %v821 = vrot.slane %v674, 2
    %v823 = vmul.f32 %v803, %v821
    %v824 = vadd.f32 %v820, %v823
    %v825 = vmul.f32 %v317, %v789
    %826 = vrot.lane.b32.xlu0 %v786, 96
    %v827 = vpop.permute.xlu0 %826
    %v829 = vmul.f32 %v324, %v827
    %831 = vrot.lane.b32.xlu0 %v829, 32
    %v832 = vpop.permute.xlu0 %831
    %v834 = vadd.f32 %v825, %v832
    %v835 = vmul.f32 %v331, %v824
    %v836 = vmul.f32 %v338, %v821
    %v837 = vadd.f32 %v835, %v836
    %839 = vrot.lane.b32.xlu0 %v834, 96
    %v840 = vpop.permute.xlu0 %839
    %v843 = vrot.slane %v837, 2
    %844 = vrot.lane.b32.xlu0 %v843, 32
    %v845 = vpop.permute.xlu0 %844
    %v847 = vsel %vm351, %v840, %v845
    %v849 = vrot.slane %v847, 6
    %v850 = vsel %vm176, %v849, 0
    %852 = vmatprep.subr.mxu0 %v147
    %853 = vmatpush1.msra.mxu0 %v146
    %854 = vmatprep.subr.mxu0 %v149
    %855 = vmatpush1.msra.mxu0 %v148
    %856 = vmatprep.subr.mxu0 %v151
    %857 = vmatpush1.msra.mxu0 %v150
    %858 = vmatprep.subr.mxu0 %v153
    %859 = vmatpush1.msra.mxu0 %v152
    %860 = vmatprep.subr.mxu0 %v155
    %861 = vmatpush1.msra.mxu0 %v154
    %862 = vmatprep.subr.mxu0 %v157
    %863 = vmatpush1.msra.mxu0 %v156
    %864 = vmatprep.subr.mxu0 %v159
    %865 = vmatpush1.msra.mxu0 %v158
    %866 = vmatprep.subr.mxu0 %v161
    %867 = vmatpush1.msra.mxu0 %v160
    %868 = vmatprep.subr.mxu0 0.0
    %869 = vmatpush1.msra.mxu0 0.0
    %870 = vmatprep.subr.mxu0 0.0
    %871 = vmatpush1.msra.mxu0 0.0
    %872 = vmatprep.subr.mxu0 0.0
    %873 = vmatpush1.msra.mxu0 0.0
    %874 = vmatprep.subr.mxu0 0.0
    %875 = vmatpush1.msra.mxu0 0.0
    %876 = vmatprep.subr.mxu0 0.0
    %877 = vmatpush1.msra.mxu0 0.0
    %878 = vmatprep.subr.mxu0 0.0
    %879 = vmatpush1.msra.mxu0 0.0
    %880 = vmatprep.subr.mxu0 0.0
    %881 = vmatpush1.msra.mxu0 0.0
    %882 = vmatprep.subr.mxu0 0.0
    %883 = vmatpush1.msra.mxu0 0.0
    %884 = vmatprep.subr.mxu0 0.0
    %885 = vmatpush1.msra.mxu0 0.0
    %886 = vmatprep.subr.mxu0 0.0
    %887 = vmatpush1.msra.mxu0 0.0
    %888 = vmatprep.subr.mxu0 0.0
    %889 = vmatpush1.msra.mxu0 0.0
    %890 = vmatprep.subr.mxu0 0.0
    %891 = vmatpush1.msra.mxu0 0.0
    %892 = vmatprep.subr.mxu0 0.0
    %893 = vmatpush1.msra.mxu0 0.0
    %894 = vmatprep.subr.mxu0 0.0
    %895 = vmatpush1.msra.mxu0 0.0
    %896 = vmatprep.subr.mxu0 0.0
    %897 = vmatpush1.msra.mxu0 0.0
    %898 = vmatprep.subr.mxu0 0.0
    %899 = vmatpush1.msra.mxu0 0.0
    %900 = vmatprep.subr.mxu0 0.0
    %901 = vmatpush1.msra.mxu0 0.0
    %902 = vmatprep.subr.mxu0 0.0
    %903 = vmatpush1.msra.mxu0 0.0
    %904 = vmatprep.subr.mxu0 0.0
    %905 = vmatpush1.msra.mxu0 0.0
    %906 = vmatprep.subr.mxu0 0.0
    %907 = vmatpush1.msra.mxu0 0.0
    %908 = vmatprep.subr.mxu0 0.0
    %909 = vmatpush1.msra.mxu0 0.0
    %910 = vmatprep.subr.mxu0 0.0
    %911 = vmatpush1.msra.mxu0 0.0
    %912 = vmatprep.subr.mxu0 0.0
    %913 = vmatpush1.msra.mxu0 0.0
    %914 = vmatprep.subr.mxu0 0.0
    %915 = vmatpush1.msra.mxu0 0.0
    %916 = vmatprep.mubr.f32.mxu0 0.0
    %917 = vmatmul.mubr.f32.gmra.mrb[0].mxu0 %v850
    %v918 = vpop.f32.mrb[0].mxu0
    %v919 = vadd.f32 %v169, %v918
    %v920 = vpop.f32.mrb[0].mxu0
    %v921 = vadd.f32 %v173, %v920
    %922 = vdwg.mxu0
    %v923 = vadd.f32 %v142, %v919
    %v924 = vxor.u32 %v923, 2147483648
    %v925 = vmul.f32 %v924, 1.442695
    %v926 = vpow.pop %v925
    %v927 = vadd.f32 %v926, 1.0
    %v928 = vrcp.pop %v927
    %v929 = vmul.f32 1.0, %v928
    %931 = vrot.lane.b32.xlu0 %v919, 64
    %v932 = vpop.permute.xlu0 %931
    %v934 = vmul.f32 %v929, %v932
    %936 = vrot.lane.b32.xlu0 %v934, 64
    %v937 = vpop.permute.xlu0 %936
    %v939 = vadd.f32 %v142, %v937
    %v940 = vtanh.pop %v939
    %v941 = vsub.f32 1.0, %v929
    %943 = vrot.lane.b32.xlu0 %v940, 96
    %v944 = vpop.permute.xlu0 %943
    %v946 = vmul.f32 %v941, %v944
    %v947 = vrot.slane %v834, 6
    %v949 = vmul.f32 %v929, %v947
    %v950 = vadd.f32 %v946, %v949
    %v951 = vrot.slane %v919, 2
    %v953 = vadd.f32 %v136, %v951
    %v954 = vxor.u32 %v953, 2147483648
    %v955 = vmul.f32 %v954, 1.442695
    %v956 = vpow.pop %v955
    %v957 = vadd.f32 %v956, 1.0
    %v958 = vrcp.pop %v957
    %v959 = vmul.f32 1.0, %v958
    %v961 = vrot.slane %v921, 2
    %v963 = vadd.f32 %v138, %v961
    %v964 = vxor.u32 %v963, 2147483648
    %v965 = vmul.f32 %v964, 1.442695
    %v966 = vpow.pop %v965
    %v967 = vadd.f32 %v966, 1.0
    %v968 = vrcp.pop %v967
    %v969 = vmul.f32 1.0, %v968
    %970 = vrot.lane.b32.xlu0 %v961, 64
    %v971 = vpop.permute.xlu0 %970
    %v973 = vmul.f32 %v959, %v971
    %975 = vrot.lane.b32.xlu0 %v973, 64
    %v976 = vpop.permute.xlu0 %975
    %v978 = vadd.f32 %v138, %v976
    %v979 = vtanh.pop %v978
    %v980 = vsub.f32 1.0, %v969
    %982 = vrot.lane.b32.xlu0 %v979, 96
    %v983 = vpop.permute.xlu0 %982
    %v985 = vmul.f32 %v980, %v983
    %v987 = vmul.f32 %v969, %v843
    %v988 = vadd.f32 %v985, %v987
    %v989 = vmul.f32 %v331, %v950
    %990 = vrot.lane.b32.xlu0 %v947, 96
    %v991 = vpop.permute.xlu0 %990
    %v993 = vmul.f32 %v338, %v991
    %995 = vrot.lane.b32.xlu0 %v993, 32
    %v996 = vpop.permute.xlu0 %995
    %v998 = vadd.f32 %v989, %v996
    %v999 = vmul.f32 %v317, %v988
    %v1000 = vmul.f32 %v324, %v843
    %v1001 = vadd.f32 %v999, %v1000
    %1003 = vrot.lane.b32.xlu0 %v998, 96
    %v1004 = vpop.permute.xlu0 %1003
    %v1007 = vrot.slane %v1001, 6
    %1008 = vrot.lane.b32.xlu0 %v1007, 32
    %v1009 = vpop.permute.xlu0 %1008
    %v1011 = vsel %vm351, %v1004, %v1009
    %v1013 = vsel %vm176, %v1011, 0
    %1015 = vmatprep.subr.mxu0 %v147
    %1016 = vmatpush1.msra.mxu0 %v146
    %1017 = vmatprep.subr.mxu0 %v149
    %1018 = vmatpush1.msra.mxu0 %v148
    %1019 = vmatprep.subr.mxu0 %v151
    %1020 = vmatpush1.msra.mxu0 %v150
    %1021 = vmatprep.subr.mxu0 %v153
    %1022 = vmatpush1.msra.mxu0 %v152
    %1023 = vmatprep.subr.mxu0 %v155
    %1024 = vmatpush1.msra.mxu0 %v154
    %1025 = vmatprep.subr.mxu0 %v157
    %1026 = vmatpush1.msra.mxu0 %v156
    %1027 = vmatprep.subr.mxu0 %v159
    %1028 = vmatpush1.msra.mxu0 %v158
    %1029 = vmatprep.subr.mxu0 %v161
    %1030 = vmatpush1.msra.mxu0 %v160
    %1031 = vmatprep.subr.mxu0 0.0
    %1032 = vmatpush1.msra.mxu0 0.0
    %1033 = vmatprep.subr.mxu0 0.0
    %1034 = vmatpush1.msra.mxu0 0.0
    %1035 = vmatprep.subr.mxu0 0.0
    %1036 = vmatpush1.msra.mxu0 0.0
    %1037 = vmatprep.subr.mxu0 0.0
    %1038 = vmatpush1.msra.mxu0 0.0
    %1039 = vmatprep.subr.mxu0 0.0
    %1040 = vmatpush1.msra.mxu0 0.0
    %1041 = vmatprep.subr.mxu0 0.0
    %1042 = vmatpush1.msra.mxu0 0.0
    %1043 = vmatprep.subr.mxu0 0.0
    %1044 = vmatpush1.msra.mxu0 0.0
    %1045 = vmatprep.subr.mxu0 0.0
    %1046 = vmatpush1.msra.mxu0 0.0
    %1047 = vmatprep.subr.mxu0 0.0
    %1048 = vmatpush1.msra.mxu0 0.0
    %1049 = vmatprep.subr.mxu0 0.0
    %1050 = vmatpush1.msra.mxu0 0.0
    %1051 = vmatprep.subr.mxu0 0.0
    %1052 = vmatpush1.msra.mxu0 0.0
    %1053 = vmatprep.subr.mxu0 0.0
    %1054 = vmatpush1.msra.mxu0 0.0
    %1055 = vmatprep.subr.mxu0 0.0
    %1056 = vmatpush1.msra.mxu0 0.0
    %1057 = vmatprep.subr.mxu0 0.0
    %1058 = vmatpush1.msra.mxu0 0.0
    %1059 = vmatprep.subr.mxu0 0.0
    %1060 = vmatpush1.msra.mxu0 0.0
    %1061 = vmatprep.subr.mxu0 0.0
    %1062 = vmatpush1.msra.mxu0 0.0
    %1063 = vmatprep.subr.mxu0 0.0
    %1064 = vmatpush1.msra.mxu0 0.0
    %1065 = vmatprep.subr.mxu0 0.0
    %1066 = vmatpush1.msra.mxu0 0.0
    %1067 = vmatprep.subr.mxu0 0.0
    %1068 = vmatpush1.msra.mxu0 0.0
    %1069 = vmatprep.subr.mxu0 0.0
    %1070 = vmatpush1.msra.mxu0 0.0
    %1071 = vmatprep.subr.mxu0 0.0
    %1072 = vmatpush1.msra.mxu0 0.0
    %1073 = vmatprep.subr.mxu0 0.0
    %1074 = vmatpush1.msra.mxu0 0.0
    %1075 = vmatprep.subr.mxu0 0.0
    %1076 = vmatpush1.msra.mxu0 0.0
    %1077 = vmatprep.subr.mxu0 0.0
    %1078 = vmatpush1.msra.mxu0 0.0
    %1079 = vmatprep.mubr.f32.mxu0 0.0
    %1080 = vmatmul.mubr.f32.gmra.mrb[0].mxu0 %v1013
    %v1081 = vpop.f32.mrb[0].mxu0
    %v1082 = vadd.f32 %v169, %v1081
    %v1083 = vpop.f32.mrb[0].mxu0
    %v1084 = vadd.f32 %v173, %v1083
    %1085 = vdwg.mxu0
    %v1087 = vrot.slane %v1082, 6
    %v1089 = vadd.f32 %v142, %v1087
    %v1090 = vxor.u32 %v1089, 2147483648
    %v1091 = vmul.f32 %v1090, 1.442695
    %v1092 = vpow.pop %v1091
    %v1093 = vadd.f32 %v1092, 1.0
    %v1094 = vrcp.pop %v1093
    %v1095 = vmul.f32 1.0, %v1094
    %1096 = vrot.lane.b32.xlu0 %v1087, 64
    %v1097 = vpop.permute.xlu0 %1096
    %v1099 = vmul.f32 %v1095, %v1097
    %1101 = vrot.lane.b32.xlu0 %v1099, 64
    %v1102 = vpop.permute.xlu0 %1101
    %v1104 = vadd.f32 %v142, %v1102
    %v1105 = vtanh.pop %v1104
    %v1106 = vsub.f32 1.0, %v1095
    %1108 = vrot.lane.b32.xlu0 %v1105, 96
    %v1109 = vpop.permute.xlu0 %1108
    %v1111 = vmul.f32 %v1106, %v1109
    %v1112 = vrot.slane %v998, 6
    %v1114 = vmul.f32 %v1095, %v1112
    %v1115 = vadd.f32 %v1111, %v1114
    %v1116 = vrot.slane %v1082, 4
    %v1118 = vadd.f32 %v136, %v1116
    %v1119 = vxor.u32 %v1118, 2147483648
    %v1120 = vmul.f32 %v1119, 1.442695
    %v1121 = vpow.pop %v1120
    %v1122 = vadd.f32 %v1121, 1.0
    %v1123 = vrcp.pop %v1122
    %v1124 = vmul.f32 1.0, %v1123
    %v1126 = vrot.slane %v1084, 4
    %v1128 = vadd.f32 %v138, %v1126
    %v1129 = vxor.u32 %v1128, 2147483648
    %v1130 = vmul.f32 %v1129, 1.442695
    %v1131 = vpow.pop %v1130
    %v1132 = vadd.f32 %v1131, 1.0
    %v1133 = vrcp.pop %v1132
    %v1134 = vmul.f32 1.0, %v1133
    %1135 = vrot.lane.b32.xlu0 %v1126, 64
    %v1136 = vpop.permute.xlu0 %1135
    %v1138 = vmul.f32 %v1124, %v1136
    %1140 = vrot.lane.b32.xlu0 %v1138, 64
    %v1141 = vpop.permute.xlu0 %1140
    %v1143 = vadd.f32 %v138, %v1141
    %v1144 = vtanh.pop %v1143
    %v1145 = vsub.f32 1.0, %v1134
    %1147 = vrot.lane.b32.xlu0 %v1144, 96
    %v1148 = vpop.permute.xlu0 %1147
    %v1150 = vmul.f32 %v1145, %v1148
    %v1151 = vrot.slane %v1001, 2
    %v1153 = vmul.f32 %v1134, %v1151
    %v1154 = vadd.f32 %v1150, %v1153
    %v1155 = vmul.f32 %v331, %v1115
    %1156 = vrot.lane.b32.xlu0 %v1112, 96
    %v1157 = vpop.permute.xlu0 %1156
    %v1159 = vmul.f32 %v338, %v1157
    %1161 = vrot.lane.b32.xlu0 %v1159, 32
    %v1162 = vpop.permute.xlu0 %1161
    %v1164 = vadd.f32 %v1155, %v1162
    %v1165 = vmul.f32 %v317, %v1154
    %v1166 = vmul.f32 %v324, %v1151
    %v1167 = vadd.f32 %v1165, %v1166
    %1169 = vrot.lane.b32.xlu0 %v1164, 96
    %v1170 = vpop.permute.xlu0 %1169
    %v1173 = vrot.slane %v1167, 2
    %1174 = vrot.lane.b32.xlu0 %v1173, 32
    %v1175 = vpop.permute.xlu0 %1174
    %v1177 = vsel %vm351, %v1170, %v1175
    %v1179 = vrot.slane %v1177, 2
    %v1180 = vsel %vm176, %v1179, 0
    %1182 = vmatprep.subr.mxu0 %v147
    %1183 = vmatpush1.msra.mxu0 %v146
    %1184 = vmatprep.subr.mxu0 %v149
    %1185 = vmatpush1.msra.mxu0 %v148
    %1186 = vmatprep.subr.mxu0 %v151
    %1187 = vmatpush1.msra.mxu0 %v150
    %1188 = vmatprep.subr.mxu0 %v153
    %1189 = vmatpush1.msra.mxu0 %v152
    %1190 = vmatprep.subr.mxu0 %v155
    %1191 = vmatpush1.msra.mxu0 %v154
    %1192 = vmatprep.subr.mxu0 %v157
    %1193 = vmatpush1.msra.mxu0 %v156
    %1194 = vmatprep.subr.mxu0 %v159
    %1195 = vmatpush1.msra.mxu0 %v158
    %1196 = vmatprep.subr.mxu0 %v161
    %1197 = vmatpush1.msra.mxu0 %v160
    %1198 = vmatprep.subr.mxu0 0.0
    %1199 = vmatpush1.msra.mxu0 0.0
    %1200 = vmatprep.subr.mxu0 0.0
    %1201 = vmatpush1.msra.mxu0 0.0
    %1202 = vmatprep.subr.mxu0 0.0
    %1203 = vmatpush1.msra.mxu0 0.0
    %1204 = vmatprep.subr.mxu0 0.0
    %1205 = vmatpush1.msra.mxu0 0.0
    %1206 = vmatprep.subr.mxu0 0.0
    %1207 = vmatpush1.msra.mxu0 0.0
    %1208 = vmatprep.subr.mxu0 0.0
    %1209 = vmatpush1.msra.mxu0 0.0
    %1210 = vmatprep.subr.mxu0 0.0
    %1211 = vmatpush1.msra.mxu0 0.0
    %1212 = vmatprep.subr.mxu0 0.0
    %1213 = vmatpush1.msra.mxu0 0.0
    %1214 = vmatprep.subr.mxu0 0.0
    %1215 = vmatpush1.msra.mxu0 0.0
    %1216 = vmatprep.subr.mxu0 0.0
    %1217 = vmatpush1.msra.mxu0 0.0
    %1218 = vmatprep.subr.mxu0 0.0
    %1219 = vmatpush1.msra.mxu0 0.0
    %1220 = vmatprep.subr.mxu0 0.0
    %1221 = vmatpush1.msra.mxu0 0.0
    %1222 = vmatprep.subr.mxu0 0.0
    %1223 = vmatpush1.msra.mxu0 0.0
    %1224 = vmatprep.subr.mxu0 0.0
    %1225 = vmatpush1.msra.mxu0 0.0
    %1226 = vmatprep.subr.mxu0 0.0
    %1227 = vmatpush1.msra.mxu0 0.0
    %1228 = vmatprep.subr.mxu0 0.0
    %1229 = vmatpush1.msra.mxu0 0.0
    %1230 = vmatprep.subr.mxu0 0.0
    %1231 = vmatpush1.msra.mxu0 0.0
    %1232 = vmatprep.subr.mxu0 0.0
    %1233 = vmatpush1.msra.mxu0 0.0
    %1234 = vmatprep.subr.mxu0 0.0
    %1235 = vmatpush1.msra.mxu0 0.0
    %1236 = vmatprep.subr.mxu0 0.0
    %1237 = vmatpush1.msra.mxu0 0.0
    %1238 = vmatprep.subr.mxu0 0.0
    %1239 = vmatpush1.msra.mxu0 0.0
    %1240 = vmatprep.subr.mxu0 0.0
    %1241 = vmatpush1.msra.mxu0 0.0
    %1242 = vmatprep.subr.mxu0 0.0
    %1243 = vmatpush1.msra.mxu0 0.0
    %1244 = vmatprep.subr.mxu0 0.0
    %1245 = vmatpush1.msra.mxu0 0.0
    %1246 = vmatprep.mubr.f32.mxu0 0.0
    %1247 = vmatmul.mubr.f32.gmra.mrb[0].mxu0 %v1180
    %v1248 = vpop.f32.mrb[0].mxu0
    %v1249 = vadd.f32 %v169, %v1248
    %v1250 = vpop.f32.mrb[0].mxu0
    %v1251 = vadd.f32 %v173, %v1250
    %1252 = vdwg.mxu0
    %v1254 = vrot.slane %v1249, 4
    %v1256 = vadd.f32 %v142, %v1254
    %v1257 = vxor.u32 %v1256, 2147483648
    %v1258 = vmul.f32 %v1257, 1.442695
    %v1259 = vpow.pop %v1258
    %v1260 = vadd.f32 %v1259, 1.0
    %v1261 = vrcp.pop %v1260
    %v1262 = vmul.f32 1.0, %v1261
    %1263 = vrot.lane.b32.xlu0 %v1254, 64
    %v1264 = vpop.permute.xlu0 %1263
    %v1266 = vmul.f32 %v1262, %v1264
    %1268 = vrot.lane.b32.xlu0 %v1266, 64
    %v1269 = vpop.permute.xlu0 %1268
    %v1271 = vadd.f32 %v142, %v1269
    %v1272 = vtanh.pop %v1271
    %v1273 = vsub.f32 1.0, %v1262
    %1275 = vrot.lane.b32.xlu0 %v1272, 96
    %v1276 = vpop.permute.xlu0 %1275
    %v1278 = vmul.f32 %v1273, %v1276
    %v1279 = vrot.slane %v1164, 6
    %v1281 = vmul.f32 %v1262, %v1279
    %v1282 = vadd.f32 %v1278, %v1281
    %v1283 = vrot.slane %v1249, 6
    %v1285 = vadd.f32 %v136, %v1283
    %v1286 = vxor.u32 %v1285, 2147483648
    %v1287 = vmul.f32 %v1286, 1.442695
    %v1288 = vpow.pop %v1287
    %v1289 = vadd.f32 %v1288, 1.0
    %v1290 = vrcp.pop %v1289
    %v1291 = vmul.f32 1.0, %v1290
    %v1293 = vrot.slane %v1251, 6
    %v1295 = vadd.f32 %v138, %v1293
    %v1296 = vxor.u32 %v1295, 2147483648
    %v1297 = vmul.f32 %v1296, 1.442695
    %v1298 = vpow.pop %v1297
    %v1299 = vadd.f32 %v1298, 1.0
    %v1300 = vrcp.pop %v1299
    %v1301 = vmul.f32 1.0, %v1300
    %1302 = vrot.lane.b32.xlu0 %v1293, 64
    %v1303 = vpop.permute.xlu0 %1302
    %v1305 = vmul.f32 %v1291, %v1303
    %1307 = vrot.lane.b32.xlu0 %v1305, 64
    %v1308 = vpop.permute.xlu0 %1307
    %v1310 = vadd.f32 %v138, %v1308
    %v1311 = vtanh.pop %v1310
    %v1312 = vsub.f32 1.0, %v1301
    %1314 = vrot.lane.b32.xlu0 %v1311, 96
    %v1315 = vpop.permute.xlu0 %1314
    %v1317 = vmul.f32 %v1312, %v1315
    %v1319 = vmul.f32 %v1301, %v1173
    %v1320 = vadd.f32 %v1317, %v1319
    %v1321 = vmul.f32 %v331, %v1282
    %1322 = vrot.lane.b32.xlu0 %v1279, 96
    %v1323 = vpop.permute.xlu0 %1322
    %v1325 = vmul.f32 %v338, %v1323
    %1327 = vrot.lane.b32.xlu0 %v1325, 32
    %v1328 = vpop.permute.xlu0 %1327
    %v1330 = vadd.f32 %v1321, %v1328
    %v1331 = vmul.f32 %v317, %v1320
    %v1332 = vmul.f32 %v324, %v1173
    %v1333 = vadd.f32 %v1331, %v1332
    %1335 = vrot.lane.b32.xlu0 %v1330, 96
    %v1336 = vpop.permute.xlu0 %1335
    %v1339 = vrot.slane %v1333, 6
    %1340 = vrot.lane.b32.xlu0 %v1339, 32
    %v1341 = vpop.permute.xlu0 %1340
    %v1343 = vsel %vm351, %v1336, %v1341
    %v1345 = vrot.slane %v1343, 4
    %v1346 = vsel %vm176, %v1345, 0
    %1348 = vmatprep.subr.mxu0 %v147
    %1349 = vmatpush1.msra.mxu0 %v146
    %1350 = vmatprep.subr.mxu0 %v149
    %1351 = vmatpush1.msra.mxu0 %v148
    %1352 = vmatprep.subr.mxu0 %v151
    %1353 = vmatpush1.msra.mxu0 %v150
    %1354 = vmatprep.subr.mxu0 %v153
    %1355 = vmatpush1.msra.mxu0 %v152
    %1356 = vmatprep.subr.mxu0 %v155
    %1357 = vmatpush1.msra.mxu0 %v154
    %1358 = vmatprep.subr.mxu0 %v157
    %1359 = vmatpush1.msra.mxu0 %v156
    %1360 = vmatprep.subr.mxu0 %v159
    %1361 = vmatpush1.msra.mxu0 %v158
    %1362 = vmatprep.subr.mxu0 %v161
    %1363 = vmatpush1.msra.mxu0 %v160
    %1364 = vmatprep.subr.mxu0 0.0
    %1365 = vmatpush1.msra.mxu0 0.0
    %1366 = vmatprep.subr.mxu0 0.0
    %1367 = vmatpush1.msra.mxu0 0.0
    %1368 = vmatprep.subr.mxu0 0.0
    %1369 = vmatpush1.msra.mxu0 0.0
    %1370 = vmatprep.subr.mxu0 0.0
    %1371 = vmatpush1.msra.mxu0 0.0
    %1372 = vmatprep.subr.mxu0 0.0
    %1373 = vmatpush1.msra.mxu0 0.0
    %1374 = vmatprep.subr.mxu0 0.0
    %1375 = vmatpush1.msra.mxu0 0.0
    %1376 = vmatprep.subr.mxu0 0.0
    %1377 = vmatpush1.msra.mxu0 0.0
    %1378 = vmatprep.subr.mxu0 0.0
    %1379 = vmatpush1.msra.mxu0 0.0
    %1380 = vmatprep.subr.mxu0 0.0
    %1381 = vmatpush1.msra.mxu0 0.0
    %1382 = vmatprep.subr.mxu0 0.0
    %1383 = vmatpush1.msra.mxu0 0.0
    %1384 = vmatprep.subr.mxu0 0.0
    %1385 = vmatpush1.msra.mxu0 0.0
    %1386 = vmatprep.subr.mxu0 0.0
    %1387 = vmatpush1.msra.mxu0 0.0
    %1388 = vmatprep.subr.mxu0 0.0
    %1389 = vmatpush1.msra.mxu0 0.0
    %1390 = vmatprep.subr.mxu0 0.0
    %1391 = vmatpush1.msra.mxu0 0.0
    %1392 = vmatprep.subr.mxu0 0.0
    %1393 = vmatpush1.msra.mxu0 0.0
    %1394 = vmatprep.subr.mxu0 0.0
    %1395 = vmatpush1.msra.mxu0 0.0
    %1396 = vmatprep.subr.mxu0 0.0
    %1397 = vmatpush1.msra.mxu0 0.0
    %1398 = vmatprep.subr.mxu0 0.0
    %1399 = vmatpush1.msra.mxu0 0.0
    %1400 = vmatprep.subr.mxu0 0.0
    %1401 = vmatpush1.msra.mxu0 0.0
    %1402 = vmatprep.subr.mxu0 0.0
    %1403 = vmatpush1.msra.mxu0 0.0
    %1404 = vmatprep.subr.mxu0 0.0
    %1405 = vmatpush1.msra.mxu0 0.0
    %1406 = vmatprep.subr.mxu0 0.0
    %1407 = vmatpush1.msra.mxu0 0.0
    %1408 = vmatprep.subr.mxu0 0.0
    %1409 = vmatpush1.msra.mxu0 0.0
    %1410 = vmatprep.subr.mxu0 0.0
    %1411 = vmatpush1.msra.mxu0 0.0
    %1412 = vmatprep.mubr.f32.mxu0 0.0
    %1413 = vmatmul.mubr.f32.gmra.mrb[0].mxu0 %v1346
    %v1414 = vpop.f32.mrb[0].mxu0
    %v1415 = vadd.f32 %v169, %v1414
    %v1416 = vpop.f32.mrb[0].mxu0
    %v1417 = vadd.f32 %v173, %v1416
    %1418 = vdwg.mxu0
    %v1420 = vrot.slane %v1415, 2
    %v1422 = vadd.f32 %v142, %v1420
    %v1423 = vxor.u32 %v1422, 2147483648
    %v1424 = vmul.f32 %v1423, 1.442695
    %v1425 = vpow.pop %v1424
    %v1426 = vadd.f32 %v1425, 1.0
    %v1427 = vrcp.pop %v1426
    %v1428 = vmul.f32 1.0, %v1427
    %1429 = vrot.lane.b32.xlu0 %v1420, 64
    %v1430 = vpop.permute.xlu0 %1429
    %v1432 = vmul.f32 %v1428, %v1430
    %1434 = vrot.lane.b32.xlu0 %v1432, 64
    %v1435 = vpop.permute.xlu0 %1434
    %v1437 = vadd.f32 %v142, %v1435
    %v1438 = vtanh.pop %v1437
    %v1439 = vsub.f32 1.0, %v1428
    %1441 = vrot.lane.b32.xlu0 %v1438, 96
    %v1442 = vpop.permute.xlu0 %1441
    %v1444 = vmul.f32 %v1439, %v1442
    %v1445 = vrot.slane %v1330, 6
    %v1447 = vmul.f32 %v1428, %v1445
    %v1448 = vadd.f32 %v1444, %v1447
    %v1449 = vadd.f32 %v136, %v1415
    %v1450 = vxor.u32 %v1449, 2147483648
    %v1451 = vmul.f32 %v1450, 1.442695
    %v1452 = vpow.pop %v1451
    %v1453 = vadd.f32 %v1452, 1.0
    %v1454 = vrcp.pop %v1453
    %v1455 = vmul.f32 1.0, %v1454
    %v1456 = vadd.f32 %v138, %v1417
    %v1457 = vxor.u32 %v1456, 2147483648
    %v1458 = vmul.f32 %v1457, 1.442695
    %v1459 = vpow.pop %v1458
    %v1460 = vadd.f32 %v1459, 1.0
    %v1461 = vrcp.pop %v1460
    %v1462 = vmul.f32 1.0, %v1461
    %1464 = vrot.lane.b32.xlu0 %v1417, 64
    %v1465 = vpop.permute.xlu0 %1464
    %v1467 = vmul.f32 %v1455, %v1465
    %1469 = vrot.lane.b32.xlu0 %v1467, 64
    %v1470 = vpop.permute.xlu0 %1469
    %v1472 = vadd.f32 %v138, %v1470
    %v1473 = vtanh.pop %v1472
    %v1474 = vsub.f32 1.0, %v1462
    %1476 = vrot.lane.b32.xlu0 %v1473, 96
    %v1477 = vpop.permute.xlu0 %1476
    %v1479 = vmul.f32 %v1474, %v1477
    %v1480 = vrot.slane %v1333, 2
    %v1482 = vmul.f32 %v1462, %v1480
    %v1483 = vadd.f32 %v1479, %v1482
    %v1484 = vmul.f32 %v331, %v1448
    %1485 = vrot.lane.b32.xlu0 %v1445, 96
    %v1486 = vpop.permute.xlu0 %1485
    %v1488 = vmul.f32 %v338, %v1486
    %1490 = vrot.lane.b32.xlu0 %v1488, 32
    %v1491 = vpop.permute.xlu0 %1490
    %v1493 = vadd.f32 %v1484, %v1491
    %v1494 = vmul.f32 %v317, %v1483
    %v1495 = vmul.f32 %v324, %v1480
    %v1496 = vadd.f32 %v1494, %v1495
    %1498 = vrot.lane.b32.xlu0 %v1493, 96
    %v1499 = vpop.permute.xlu0 %1498
    %v1502 = vrot.slane %v1496, 2
    %1503 = vrot.lane.b32.xlu0 %v1502, 32
    %v1504 = vpop.permute.xlu0 %1503
    %v1506 = vsel %vm351, %v1499, %v1504
    %v1507 = vld [vmem:[%s6] sm:$0xff]
    %v1508 = vld [vmem:[%s6 + $0x8] sm:$0xff]
    %v1509 = vld [vmem:[%s6 + $0x10] sm:$0xff]
    %v1510 = vld [vmem:[%s6 + $0x18] sm:$0xff]
    %v1511 = vld [vmem:[%s6 + $0x20] sm:$0xff]
    %v1512 = vld [vmem:[%s6 + $0x28] sm:$0xff]
    %v1513 = vld [vmem:[%s6 + $0x30] sm:$0xff]
    %v1514 = vld [vmem:[%s6 + $0x38] sm:$0xff]
    %v1515 = vld [vmem:[%s7] sm:$0x1]
    %v1517 = vlaneseq
    %v1518 = vshrl.u32 %v1517, 7
    %v1519 = vsub.s32 0, %v1518
    %v1520 = vrot.slane %v1515, %v1519
    %v1523 = vrot.slane %v1506, 6
    %v1524 = vsel %vm176, %v1523, 0
    %1526 = vmatprep.subr.mxu0 0.0
    %1527 = vmatpush1.msra.mxu0 %v1507
    %1528 = vmatprep.subr.mxu0 0.0
    %1529 = vmatpush1.msra.mxu0 %v1508
    %1530 = vmatprep.subr.mxu0 0.0
    %1531 = vmatpush1.msra.mxu0 %v1509
    %1532 = vmatprep.subr.mxu0 0.0
    %1533 = vmatpush1.msra.mxu0 %v1510
    %1534 = vmatprep.subr.mxu0 0.0
    %1535 = vmatpush1.msra.mxu0 %v1511
    %1536 = vmatprep.subr.mxu0 0.0
    %1537 = vmatpush1.msra.mxu0 %v1512
    %1538 = vmatprep.subr.mxu0 0.0
    %1539 = vmatpush1.msra.mxu0 %v1513
    %1540 = vmatprep.subr.mxu0 0.0
    %1541 = vmatpush1.msra.mxu0 %v1514
    %1542 = vmatprep.subr.mxu0 0.0
    %1543 = vmatpush1.msra.mxu0 0.0
    %1544 = vmatprep.subr.mxu0 0.0
    %1545 = vmatpush1.msra.mxu0 0.0
    %1546 = vmatprep.subr.mxu0 0.0
    %1547 = vmatpush1.msra.mxu0 0.0
    %1548 = vmatprep.subr.mxu0 0.0
    %1549 = vmatpush1.msra.mxu0 0.0
    %1550 = vmatprep.subr.mxu0 0.0
    %1551 = vmatpush1.msra.mxu0 0.0
    %1552 = vmatprep.subr.mxu0 0.0
    %1553 = vmatpush1.msra.mxu0 0.0
    %1554 = vmatprep.subr.mxu0 0.0
    %1555 = vmatpush1.msra.mxu0 0.0
    %1556 = vmatprep.subr.mxu0 0.0
    %1557 = vmatpush1.msra.mxu0 0.0
    %1558 = vmatprep.subr.mxu0 0.0
    %1559 = vmatpush1.msra.mxu0 0.0
    %1560 = vmatprep.subr.mxu0 0.0
    %1561 = vmatpush1.msra.mxu0 0.0
    %1562 = vmatprep.subr.mxu0 0.0
    %1563 = vmatpush1.msra.mxu0 0.0
    %1564 = vmatprep.subr.mxu0 0.0
    %1565 = vmatpush1.msra.mxu0 0.0
    %1566 = vmatprep.subr.mxu0 0.0
    %1567 = vmatpush1.msra.mxu0 0.0
    %1568 = vmatprep.subr.mxu0 0.0
    %1569 = vmatpush1.msra.mxu0 0.0
    %1570 = vmatprep.subr.mxu0 0.0
    %1571 = vmatpush1.msra.mxu0 0.0
    %1572 = vmatprep.subr.mxu0 0.0
    %1573 = vmatpush1.msra.mxu0 0.0
    %1574 = vmatprep.subr.mxu0 0.0
    %1575 = vmatpush1.msra.mxu0 0.0
    %1576 = vmatprep.subr.mxu0 0.0
    %1577 = vmatpush1.msra.mxu0 0.0
    %1578 = vmatprep.subr.mxu0 0.0
    %1579 = vmatpush1.msra.mxu0 0.0
    %1580 = vmatprep.subr.mxu0 0.0
    %1581 = vmatpush1.msra.mxu0 0.0
    %1582 = vmatprep.subr.mxu0 0.0
    %1583 = vmatpush1.msra.mxu0 0.0
    %1584 = vmatprep.subr.mxu0 0.0
    %1585 = vmatpush1.msra.mxu0 0.0
    %1586 = vmatprep.subr.mxu0 0.0
    %1587 = vmatpush1.msra.mxu0 0.0
    %1588 = vmatprep.subr.mxu0 0.0
    %1589 = vmatpush1.msra.mxu0 0.0
    %1590 = vmatprep.mubr.f32.mxu0 0.0
    %1591 = vmatmul.mubr.f32.gmra.mrb[0].mxu0 %v1524
    %v1592 = vpop.f32.mrb[0].mxu0
    %v1593 = vadd.f32 %v1520, %v1592
    %v1594 = vpop.f32.mrb[0].mxu0
    %1595 = vdwg.mxu0
    %vm1596 = vcmask 58368
    %1597 = vst.msk [vmem:[#allocation5] sm:$0x3] %vm1596, %v1593
    // Predicated region
    $region38: #{tpu_custom_call.1} parent=1 // pred_check
      _
    $region39: #{tpu_custom_call.1} parent=1 // pred_check_branch
      %1599 = sbr.rel (0) target = $region41
    $region40: #{tpu_custom_call.1} parent=1 // pred_region
      %s1601 = ssub.s32 32, 32
      %1602 = vsyncadd [#allocation4], %s1601
      %s1604 = sshll.u32 [#allocation5], 4
      %s1605 = int_to_ptr.vmem [resolvable:$true] %s1604
      %1607 = dma.vmem_to_hbm [thread:$0]  %s1605, 32, %s8, [#allocation4]
    $region41: #{tpu_custom_call.1} parent=1 // pred_fallthru
      _
    // Predicated region
    $region42: #{tpu_custom_call.1} parent=1 // pred_check
      _
    $region43: #{tpu_custom_call.1} parent=1 // pred_check_branch
      %1609 = sbr.rel (0) target = $region45
    $region44: #{tpu_custom_call.1} parent=1 // pred_region
      %1610 = dma.done [#allocation4], 32
    $region45: #{tpu_custom_call.1} parent=1 // pred_fallthru
      _
    %1611 = vsyncpa [#allocation3], 1
    %1612 = vsyncpa [#allocation4], 1

</llo_original>
